<compile_context>
chip_gen: v7x
topology: tpu7x:2x2x1
jax: 0.10.0
libtpu: 0.0.40
codegen_flags: <defaults>
</compile_context>

<pallas_src>
import functools
import numpy as np

import jax
import jax.numpy as jnp
from jax.experimental import pallas as pl
from jax.experimental.pallas import tpu as pltpu


# ----------------------------------------------------------------------------
# Fused Pallas kernel: all GAT layers + global_mean_pool + MLP head
# ----------------------------------------------------------------------------
def fused_gat_kernel(num_heads, head_dim, num_layers, tile_i, *refs):
    """Grid (num_layers, num_row_tiles), both sequential.

    inputs : x[N,Fin] f32, adj_bias[TILE_I,N] bf16 (0 edge / -1e30 non-edge),
             pool[B,N] f32, per layer (w_aug[Fin_l,HF+2H] bf16, bias[1,HF] f32),
             lin1_w, lin1_b, lin2_w, lin2_b (f32)
    output : out[B,1] f32
    scratch: feat[2,N,HF] f32 (ping-pong node features across layers),
             he[N,HF+2H] f32 (h|e staged once per layer at tile 0),
             esrcT[H,N] f32 (transposed source logits, once per layer)
    """
    hf = num_heads * head_dim
    n_in = 3 + 2 * num_layers + 4
    x_ref, adjb_ref, pool_ref = refs[0], refs[1], refs[2]
    conv_refs = refs[3:3 + 2 * num_layers]
    lin1w_ref, lin1b_ref, lin2w_ref, lin2b_ref = refs[3 + 2 * num_layers:n_in]
    out_ref = refs[n_in]
    feat_ref, he_ref, esrcT_ref = refs[n_in + 1], refs[n_in + 2], refs[n_in + 3]

    n = x_ref.shape[0]
    layer = pl.program_id(0)
    tile = pl.program_id(1)
    last_tile = pl.num_programs(1) - 1
    r0 = pl.multiple_of(tile * tile_i, tile_i)

    adj_bias = adjb_ref[...].astype(jnp.float32)      # additive mask tile, hoisted
    ones_col = jnp.ones((n, 1), jnp.float32)          # denominator rider, hoisted

    for l in range(num_layers):
        w_aug_ref = conv_refs[2 * l]
        bias_ref = conv_refs[2 * l + 1]
        wslot = l % 2                                  # slab written by layer l
        rslot = (l - 1) % 2                            # slab read by layer l (l >= 1)

        @pl.when(layer == l)
        def _layer(l=l, w_aug_ref=w_aug_ref, bias_ref=bias_ref,
                   wslot=wslot, rslot=rslot):
            # --- once per layer (tile 0): h|e for ALL nodes via the folded matmul ---
            @pl.when(tile == 0)
            def _stage():
                src = x_ref[...] if l == 0 else feat_ref[rslot]
                he_all = jnp.dot(src.astype(jnp.bfloat16), w_aug_ref[...],
                                 preferred_element_type=jnp.float32)   # [N, HF+2H]
                he_ref[...] = he_all
                # only the *source* half needs a relayout (review item)
                esrcT_ref[...] = jnp.transpose(he_all[:, hf + num_heads:])  # [H, N]

            he = he_ref[...]                                            # [N, HF+2H]
            e_dst = he_ref[pl.ds(r0, tile_i), hf:hf + num_heads]        # [TILE_I, H]

            for hd in range(num_heads):
                c0 = hd * head_dim
                # e_ij = a_dst.h_i + a_src.h_j -> LeakyReLU(0.2) -> + mask bias
                logits = e_dst[:, hd:hd + 1] + esrcT_ref[hd:hd + 1, :]  # [TILE_I, N]
                logits = jnp.maximum(logits, 0.2 * logits)
                logits = logits + adj_bias
                m = jnp.max(logits, axis=1, keepdims=True)
                p = jnp.exp(logits - m)                                 # unnormalized, f32
                # softmax denominator folded into the aggregation matmul
                hh_aug = jnp.concatenate([he[:, c0:c0 + head_dim], ones_col], axis=1)
                s = jnp.dot(p.astype(jnp.bfloat16), hh_aug.astype(jnp.bfloat16),
                            preferred_element_type=jnp.float32)         # [TILE_I, F+1]
                head_out = s[:, :head_dim] * pl.reciprocal(
                    s[:, head_dim:head_dim + 1], approx=True)
                # bias + ReLU fused into the per-head slab store (no concatenate)
                head_out = jnp.maximum(head_out + bias_ref[:, c0:c0 + head_dim], 0.0)
                feat_ref[wslot, pl.ds(r0, tile_i), c0:c0 + head_dim] = head_out

    # --- epilogue on the VMEM-resident final features: mean-pool + MLP head ---
    @pl.when(jnp.logical_and(layer == num_layers - 1, tile == last_tile))
    def _epilogue():
        feats = feat_ref[(num_layers - 1) % 2]                          # [N, HF]
        pooled = jnp.dot(pool_ref[...], feats, preferred_element_type=jnp.float32)
        hid = jnp.dot(pooled, lin1w_ref[...],
                      preferred_element_type=jnp.float32) + lin1b_ref[...]
        hid = jnp.maximum(hid, 0.0)
        out_ref[...] = jnp.dot(hid, lin2w_ref[...],
                               preferred_element_type=jnp.float32) + lin2b_ref[...]


# ----------------------------------------------------------------------------
# Wrapper
# ----------------------------------------------------------------------------
def gat_classifier_forward(x, adj_bias, pool_mat, params, *, tile_i=None):
    num_layers = len(params["convs"])
    heads = params["convs"][0]["heads"]
    head_dim = params["convs"][0]["head_dim"]
    hf = heads * head_dim
    n = x.shape[0]
    b = pool_mat.shape[0]

    if tile_i is None:
        tile_i = n if n <= 256 else 256
    assert n % tile_i == 0 and tile_i % 8 == 0
    num_tiles = n // tile_i

    def _full(shape):
        return pl.BlockSpec(shape, lambda l, t: (0,) * len(shape))

    args = [x, adj_bias, pool_mat]
    in_specs = [_full(x.shape),
                pl.BlockSpec((tile_i, n), lambda l, t: (t, 0)),
                _full(pool_mat.shape)]
    for layer in params["convs"]:
        args += [layer["w_aug"], layer["bias"]]
        in_specs += [_full(layer["w_aug"].shape), _full(layer["bias"].shape)]
    tail = [params["lin1_w"], params["lin1_b"], params["lin2_w"], params["lin2_b"]]
    args += tail
    in_specs += [_full(a.shape) for a in tail]

    # Advisory cost estimate for XLA scheduling.
    flops, fin_l = 0, x.shape[1]
    for _ in range(num_layers):
        flops += 2 * n * fin_l * (hf + 2 * heads)
        flops += heads * (2 * n * n * (head_dim + 1) + 4 * n * n)
        fin_l = hf
    flops += 2 * b * n * hf + 2 * b * hf * 128 + 2 * b * 128
    bytes_accessed = (num_layers * int(adj_bias.size) * adj_bias.dtype.itemsize
                      + sum(int(a.size) * a.dtype.itemsize for a in args) + 4 * b)
    cost = pl.CostEstimate(flops=int(flops),
                           transcendentals=int(num_layers * heads * n * n),
                           bytes_accessed=int(bytes_accessed))

    kernel = functools.partial(fused_gat_kernel, heads, head_dim, num_layers, tile_i)
    out = pl.pallas_call(
        kernel,
        out_shape=jax.ShapeDtypeStruct((b, 1), jnp.float32),
        grid=(num_layers, num_tiles),
        in_specs=in_specs,
        out_specs=pl.BlockSpec((b, 1), lambda l, t: (0, 0)),
        scratch_shapes=[
            pltpu.VMEM((2, n, hf), jnp.float32),             # feature slab (ping-pong)
            pltpu.VMEM((n, hf + 2 * heads), jnp.float32),    # per-layer h|e staging
            pltpu.VMEM((heads, n), jnp.float32),             # transposed source logits
        ],
        compiler_params=pltpu.CompilerParams(
            dimension_semantics=("arbitrary", "arbitrary"),  # layer chain + slab carry
            vmem_limit_bytes=32 * 1024 * 1024),
        cost_estimate=cost,
    )(*args)
    return jnp.squeeze(out)   # matches x.squeeze()


# ----------------------------------------------------------------------------
# Deterministic parameters / data (W_aug folded once here, per review)
# ----------------------------------------------------------------------------
def init_params(key, in_channels, hidden_channels, num_heads, num_layers):
    params = {"convs": []}
    fin = in_channels
    hf = hidden_channels * num_heads
    for _ in range(num_layers):
        key, k_w, k_as, k_ad = jax.random.split(key, 4)
        w = jax.random.normal(k_w, (fin, hf), jnp.float32) * (1.0 / np.sqrt(fin))
        a_src = jax.random.normal(k_as, (num_heads, hidden_channels), jnp.float32) * 0.1
        a_dst = jax.random.normal(k_ad, (num_heads, hidden_channels), jnp.float32) * 0.1
        bias = jnp.zeros((1, hf), jnp.float32)
        # Fold attention projections into the weight matmul: W_aug = [W | W @ A].
        A = np.zeros((hf, 2 * num_heads), np.float32)
        a_src_np, a_dst_np = np.asarray(a_src), np.asarray(a_dst)
        for h in range(num_heads):
            lo = h * hidden_channels
            A[lo:lo + hidden_channels, h] = a_dst_np[h]
            A[lo:lo + hidden_channels, num_heads + h] = a_src_np[h]
        w_aug = jnp.concatenate([w, w @ jnp.asarray(A)], axis=1).astype(jnp.bfloat16)
        params["convs"].append(dict(w=w, a_src=a_src, a_dst=a_dst, bias=bias,
                                    w_aug=w_aug, heads=num_heads,
                                    head_dim=hidden_channels))
        fin = hf
    key, k1, k2 = jax.random.split(key, 3)
    params["lin1_w"] = jax.random.normal(k1, (hf, 128), jnp.float32) * (1.0 / np.sqrt(hf))
    params["lin1_b"] = jnp.zeros((1, 128), jnp.float32)
    params["lin2_w"] = jax.random.normal(k2, (128, 1), jnp.float32) * (1.0 / np.sqrt(128))
    params["lin2_b"] = jnp.zeros((1, 1), jnp.float32)
    return params


def build_graph(num_graphs, nodes_per_graph):
    """Ring per sub-graph + self loops; dense adjacency [tgt, src] + mean-pool matrix."""
    n = num_graphs * nodes_per_graph
    adj = np.zeros((n, n), np.float32)
    batch = np.zeros((n,), np.int32)
    for g in range(num_graphs):
        base = g * nodes_per_graph
        for k in range(nodes_per_graph):
            i = base + k
            j = base + (k + 1) % nodes_per_graph
            adj[j, i] = 1.0
            adj[i, j] = 1.0
            batch[i] = g
    np.fill_diagonal(adj, 1.0)                       # add_self_loops=True
    pool = np.zeros((num_graphs, n), np.float32)
    for g in range(num_graphs):
        idx = np.where(batch == g)[0]
        pool[g, idx] = 1.0 / len(idx)
    return jnp.asarray(adj), jnp.asarray(pool)


def gat_reference(x, adj, pool_mat, params):
    """Pure-JAX f32 reference with PyG GATConv semantics."""
    h = x
    for layer in params["convs"]:
        w, a_src, a_dst, bias = layer["w"], layer["a_src"], layer["a_dst"], layer["bias"]
        heads, fdim = layer["heads"], layer["head_dim"]
        hw = h @ w
        outs = []
        for hd in range(heads):
            hh = hw[:, hd * fdim:(hd + 1) * fdim]
            logits = (hh @ a_dst[hd])[:, None] + (hh @ a_src[hd])[None, :]
            logits = jnp.where(logits > 0, logits, 0.2 * logits)
            logits = jnp.where(adj > 0, logits, -1e30)
            alpha = jax.nn.softmax(logits, axis=1)
            outs.append(alpha @ hh)
        h = jnp.maximum(jnp.concatenate(outs, axis=1) + bias, 0.0)
    pooled = pool_mat @ h
    hid = jnp.maximum(pooled @ params["lin1_w"] + params["lin1_b"], 0.0)
    return jnp.squeeze(hid @ params["lin2_w"] + params["lin2_b"])


# ----------------------------------------------------------------------------
if __name__ == "__main__":
    in_channels, hidden_channels, num_heads, num_layers = 8, 8, 2, 2
    num_graphs, nodes_per_graph = 2, 32
    num_nodes = num_graphs * nodes_per_graph          # 64 nodes -> 4 row tiles of 16

    key = jax.random.PRNGKey(0)
    key, k_x, k_p = jax.random.split(key, 3)

    x = jax.random.normal(k_x, (num_nodes, in_channels), jnp.float32)
    adj, pool_mat = build_graph(num_graphs, nodes_per_graph)
    # Additive attention mask: 0 on edges (incl. self loops), -1e30 elsewhere, bf16.
    adj_bias = jnp.where(adj > 0, 0.0, -1e30).astype(jnp.bfloat16)
    params = init_params(k_p, in_channels, hidden_channels, num_heads, num_layers)

    out = gat_classifier_forward(x, adj_bias, pool_mat, params, tile_i=16)
    out = jax.block_until_ready(out)

    ref = gat_reference(x, adj, pool_mat, params)
    assert out.shape == (num_graphs,)
    assert jnp.all(jnp.isfinite(out))
    # loose tolerance accounts for bf16 MXU operands + approx reciprocal in the kernel
    assert jnp.allclose(out, ref, rtol=1e-1, atol=1e-1), (out, ref)
    print("KERNEL_OK")
</pallas_src>

<mosaic_0001>
module attributes {stable_mosaic.version = 11 : i64} {
  func.func @fused_gat_kernel(%arg0: i32, %arg1: i32, %arg2: memref<64x8xf32, #tpu.memory_space<vmem>>, %arg3: memref<16x64xbf16, #tpu.memory_space<vmem>>, %arg4: memref<2x64xf32, #tpu.memory_space<vmem>>, %arg5: memref<8x20xbf16, #tpu.memory_space<vmem>>, %arg6: memref<1x16xf32, #tpu.memory_space<vmem>>, %arg7: memref<16x20xbf16, #tpu.memory_space<vmem>>, %arg8: memref<1x16xf32, #tpu.memory_space<vmem>>, %arg9: memref<16x128xf32, #tpu.memory_space<vmem>>, %arg10: memref<1x128xf32, #tpu.memory_space<vmem>>, %arg11: memref<128x1xf32, #tpu.memory_space<vmem>>, %arg12: memref<1x1xf32, #tpu.memory_space<vmem>>, %arg13: memref<2x1xf32, #tpu.memory_space<vmem>>, %arg14: memref<2x64x16xf32, #tpu.memory_space<vmem>>, %arg15: memref<64x20xf32, #tpu.memory_space<vmem>>, %arg16: memref<2x64xf32, #tpu.memory_space<vmem>>) attributes {dimension_semantics = [#tpu.dimension_semantics<arbitrary>, #tpu.dimension_semantics<arbitrary>], iteration_bounds = array<i64: 2, 4>, scalar_prefetch = 0 : i64, scratch_operands = 3 : i64, tpu.core_type = #tpu.core_type<tc>, window_params = [{pipeline_mode = #tpu.pipeline_mode<synchronous>, transform_indices = @transform_0, window_bounds = array<i64: 64, 8>}, {transform_indices = @transform_1, window_bounds = array<i64: 16, 64>}, {pipeline_mode = #tpu.pipeline_mode<synchronous>, transform_indices = @transform_2, window_bounds = array<i64: 2, 64>}, {pipeline_mode = #tpu.pipeline_mode<synchronous>, transform_indices = @transform_3, window_bounds = array<i64: 8, 20>}, {pipeline_mode = #tpu.pipeline_mode<synchronous>, transform_indices = @transform_4, window_bounds = array<i64: 1, 16>}, {pipeline_mode = #tpu.pipeline_mode<synchronous>, transform_indices = @transform_5, window_bounds = array<i64: 16, 20>}, {pipeline_mode = #tpu.pipeline_mode<synchronous>, transform_indices = @transform_6, window_bounds = array<i64: 1, 16>}, {pipeline_mode = #tpu.pipeline_mode<synchronous>, transform_indices = @transform_7, window_bounds = array<i64: 16, 128>}, {pipeline_mode = #tpu.pipeline_mode<synchronous>, transform_indices = @transform_8, window_bounds = array<i64: 1, 128>}, {pipeline_mode = #tpu.pipeline_mode<synchronous>, transform_indices = @transform_9, window_bounds = array<i64: 128, 1>}, {pipeline_mode = #tpu.pipeline_mode<synchronous>, transform_indices = @transform_10, window_bounds = array<i64: 1, 1>}, {pipeline_mode = #tpu.pipeline_mode<synchronous>, transform_indices = @transform_11, window_bounds = array<i64: 2, 1>}]} {
    %c16_i32 = arith.constant 16 : i32
    %0 = arith.muli %arg1, %c16_i32 : i32
    %1 = tpu.assume_multiple %0, 16 : i32
    %c0 = arith.constant 0 : index
    %c0_0 = arith.constant 0 : index
    %2 = vector.load %arg3[%c0, %c0_0] : memref<16x64xbf16, #tpu.memory_space<vmem>>, vector<16x64xbf16>
    %3 = arith.extf %2 : vector<16x64xbf16> to vector<16x64xf32>
    %cst = arith.constant 1.000000e+00 : f32
    %4 = vector.broadcast %cst : f32 to vector<64x1xf32>
    %c0_i32 = arith.constant 0 : i32
    %5 = arith.cmpi eq, %arg0, %c0_i32 : i32
    %6 = arith.extui %5 : i1 to i32
    %c0_i32_1 = arith.constant 0 : i32
    %7 = arith.cmpi ne, %6, %c0_i32_1 : i32
    scf.if %7 {
      %c0_i32_5 = arith.constant 0 : i32
      %16 = arith.cmpi eq, %arg1, %c0_i32_5 : i32
      %17 = arith.extui %16 : i1 to i32
      %c0_i32_6 = arith.constant 0 : i32
      %18 = arith.cmpi ne, %17, %c0_i32_6 : i32
      scf.if %18 {
        %c0_27 = arith.constant 0 : index
        %c0_28 = arith.constant 0 : index
        %88 = vector.load %arg2[%c0_27, %c0_28] : memref<64x8xf32, #tpu.memory_space<vmem>>, vector<64x8xf32>
        %89 = arith.truncf %88 : vector<64x8xf32> to vector<64x8xbf16>
        %c0_29 = arith.constant 0 : index
        %c0_30 = arith.constant 0 : index
        %90 = vector.load %arg5[%c0_29, %c0_30] : memref<8x20xbf16, #tpu.memory_space<vmem>>, vector<8x20xbf16>
        %cst_31 = arith.constant dense<0.000000e+00> : vector<64x20xf32>
        %91 = tpu.matmul %89, %90, %cst_31 {dimension_numbers = #tpu.dot_dimension_numbers<[1], [0], [0], [1], [0, 0, 1, 1], [], []>} : vector<64x8xbf16>, vector<8x20xbf16>, vector<64x20xf32> -> vector<64x20xf32>
        %c0_32 = arith.constant 0 : index
        %c0_33 = arith.constant 0 : index
        %92 = vector.load %arg15[%c0_32, %c0_33] : memref<64x20xf32, #tpu.memory_space<vmem>>, vector<64x20xf32>
        tpu.vector_store %arg15[%c0_32, %c0_33], %91 {strides = array<i32>} : memref<64x20xf32, #tpu.memory_space<vmem>>, vector<64x20xf32>,
        %93 = vector.extract_strided_slice %91 {offsets = [0, 18], sizes = [64, 2], strides = [1, 1]} : vector<64x20xf32> to vector<64x2xf32>
        %94 = tpu.transpose %93, [1, 0] : vector<64x2xf32> -> vector<2x64xf32>
        %c0_34 = arith.constant 0 : index
        %c0_35 = arith.constant 0 : index
        %95 = vector.load %arg16[%c0_34, %c0_35] : memref<2x64xf32, #tpu.memory_space<vmem>>, vector<2x64xf32>
        tpu.vector_store %arg16[%c0_34, %c0_35], %94 {strides = array<i32>} : memref<2x64xf32, #tpu.memory_space<vmem>>, vector<2x64xf32>,
      } else {
      }
      %c0_7 = arith.constant 0 : index
      %c0_8 = arith.constant 0 : index
      %19 = vector.load %arg15[%c0_7, %c0_8] : memref<64x20xf32, #tpu.memory_space<vmem>>, vector<64x20xf32>
      %20 = arith.index_cast %1 : i32 to index
      %c16 = arith.constant 16 : index
      %21 = vector.load %arg15[%20, %c16] : memref<64x20xf32, #tpu.memory_space<vmem>>, vector<16x2xf32>
      %22 = vector.extract_strided_slice %21 {offsets = [0, 0], sizes = [16, 1], strides = [1, 1]} : vector<16x2xf32> to vector<16x1xf32>
      %c0_9 = arith.constant 0 : index
      %c0_10 = arith.constant 0 : index
      %23 = vector.load %arg16[%c0_9, %c0_10] : memref<2x64xf32, #tpu.memory_space<vmem>>, vector<1x64xf32>
      %24 = vector.broadcast %22 : vector<16x1xf32> to vector<16x64xf32>
      %25 = vector.broadcast %23 : vector<1x64xf32> to vector<16x64xf32>
      %26 = arith.addf %24, %25 : vector<16x64xf32>
      %cst_11 = arith.constant 2.000000e-01 : f32
      %27 = vector.broadcast %cst_11 : f32 to vector<16x64xf32>
      %28 = arith.mulf %27, %26 : vector<16x64xf32>
      %29 = arith.maximumf %26, %28 : vector<16x64xf32>
      %30 = arith.addf %29, %3 : vector<16x64xf32>
      %cst_12 = arith.constant dense<0xFF800000> : vector<16xf32>
      %31 = vector.multi_reduction <maximumf>, %30, %cst_12 [1] : vector<16x64xf32> to vector<16xf32>
      %32 = vector.shape_cast %31 : vector<16xf32> to vector<16x1xf32>
      %33 = vector.broadcast %32 : vector<16x1xf32> to vector<16x64xf32>
      %34 = arith.subf %30, %33 : vector<16x64xf32>
      %35 = math.exp %34 : vector<16x64xf32>
      %36 = vector.extract_strided_slice %19 {offsets = [0, 0], sizes = [64, 8], strides = [1, 1]} : vector<64x20xf32> to vector<64x8xf32>
      %37 = tpu.concatenate %36, %4 in 1 : vector<64x8xf32>, vector<64x1xf32> -> vector<64x9xf32>
      %38 = arith.truncf %35 : vector<16x64xf32> to vector<16x64xbf16>
      %39 = arith.truncf %37 : vector<64x9xf32> to vector<64x9xbf16>
      %cst_13 = arith.constant dense<0.000000e+00> : vector<16x9xf32>
      %40 = tpu.matmul %38, %39, %cst_13 {dimension_numbers = #tpu.dot_dimension_numbers<[1], [0], [0], [1], [0, 0, 1, 1], [], []>} : vector<16x64xbf16>, vector<64x9xbf16>, vector<16x9xf32> -> vector<16x9xf32>
      %41 = vector.extract_strided_slice %40 {offsets = [0, 0], sizes = [16, 8], strides = [1, 1]} : vector<16x9xf32> to vector<16x8xf32>
      %42 = vector.extract_strided_slice %40 {offsets = [0, 8], sizes = [16, 1], strides = [1, 1]} : vector<16x9xf32> to vector<16x1xf32>
      %43 = tpu.reciprocal %42 {approx = true} : vector<16x1xf32> -> vector<16x1xf32>
      %44 = vector.broadcast %43 : vector<16x1xf32> to vector<16x8xf32>
      %45 = arith.mulf %41, %44 : vector<16x8xf32>
      %c0_14 = arith.constant 0 : index
      %c0_15 = arith.constant 0 : index
      %46 = vector.load %arg6[%c0_14, %c0_15] : memref<1x16xf32, #tpu.memory_space<vmem>>, vector<1x8xf32>
      %47 = vector.broadcast %46 : vector<1x8xf32> to vector<16x8xf32>
      %48 = arith.addf %45, %47 : vector<16x8xf32>
      %cst_16 = arith.constant 0.000000e+00 : f32
      %49 = vector.broadcast %cst_16 : f32 to vector<16x8xf32>
      %50 = arith.maximumf %48, %49 : vector<16x8xf32>
      %c0_17 = arith.constant 0 : index
      %51 = arith.index_cast %1 : i32 to index
      %c0_18 = arith.constant 0 : index
      %52 = vector.load %arg14[%c0_17, %51, %c0_18] : memref<2x64x16xf32, #tpu.memory_space<vmem>>, vector<1x16x8xf32>
      %53 = vector.shape_cast %52 : vector<1x16x8xf32> to vector<16x8xf32>
      %54 = vector.shape_cast %50 : vector<16x8xf32> to vector<1x16x8xf32>
      tpu.vector_store %arg14[%c0_17, %51, %c0_18], %54 {strides = array<i32>} : memref<2x64x16xf32, #tpu.memory_space<vmem>>, vector<1x16x8xf32>,
      %55 = vector.extract_strided_slice %21 {offsets = [0, 1], sizes = [16, 1], strides = [1, 1]} : vector<16x2xf32> to vector<16x1xf32>
      %c1 = arith.constant 1 : index
      %c0_19 = arith.constant 0 : index
      %56 = vector.load %arg16[%c1, %c0_19] : memref<2x64xf32, #tpu.memory_space<vmem>>, vector<1x64xf32>
      %57 = vector.broadcast %55 : vector<16x1xf32> to vector<16x64xf32>
      %58 = vector.broadcast %56 : vector<1x64xf32> to vector<16x64xf32>
      %59 = arith.addf %57, %58 : vector<16x64xf32>
      %cst_20 = arith.constant 2.000000e-01 : f32
      %60 = vector.broadcast %cst_20 : f32 to vector<16x64xf32>
      %61 = arith.mulf %60, %59 : vector<16x64xf32>
      %62 = arith.maximumf %59, %61 : vector<16x64xf32>
      %63 = arith.addf %62, %3 : vector<16x64xf32>
      %cst_21 = arith.constant dense<0xFF800000> : vector<16xf32>
      %64 = vector.multi_reduction <maximumf>, %63, %cst_21 [1] : vector<16x64xf32> to vector<16xf32>
      %65 = vector.shape_cast %64 : vector<16xf32> to vector<16x1xf32>
      %66 = vector.broadcast %65 : vector<16x1xf32> to vector<16x64xf32>
      %67 = arith.subf %63, %66 : vector<16x64xf32>
      %68 = math.exp %67 : vector<16x64xf32>
      %69 = vector.extract_strided_slice %19 {offsets = [0, 8], sizes = [64, 8], strides = [1, 1]} : vector<64x20xf32> to vector<64x8xf32>
      %70 = tpu.concatenate %69, %4 in 1 : vector<64x8xf32>, vector<64x1xf32> -> vector<64x9xf32>
      %71 = arith.truncf %68 : vector<16x64xf32> to vector<16x64xbf16>
      %72 = arith.truncf %70 : vector<64x9xf32> to vector<64x9xbf16>
      %cst_22 = arith.constant dense<0.000000e+00> : vector<16x9xf32>
      %73 = tpu.matmul %71, %72, %cst_22 {dimension_numbers = #tpu.dot_dimension_numbers<[1], [0], [0], [1], [0, 0, 1, 1], [], []>} : vector<16x64xbf16>, vector<64x9xbf16>, vector<16x9xf32> -> vector<16x9xf32>
      %74 = vector.extract_strided_slice %73 {offsets = [0, 0], sizes = [16, 8], strides = [1, 1]} : vector<16x9xf32> to vector<16x8xf32>
      %75 = vector.extract_strided_slice %73 {offsets = [0, 8], sizes = [16, 1], strides = [1, 1]} : vector<16x9xf32> to vector<16x1xf32>
      %76 = tpu.reciprocal %75 {approx = true} : vector<16x1xf32> -> vector<16x1xf32>
      %77 = vector.broadcast %76 : vector<16x1xf32> to vector<16x8xf32>
      %78 = arith.mulf %74, %77 : vector<16x8xf32>
      %c0_23 = arith.constant 0 : index
      %c8 = arith.constant 8 : index
      %79 = vector.load %arg6[%c0_23, %c8] : memref<1x16xf32, #tpu.memory_space<vmem>>, vector<1x8xf32>
      %80 = vector.broadcast %79 : vector<1x8xf32> to vector<16x8xf32>
      %81 = arith.addf %78, %80 : vector<16x8xf32>
      %cst_24 = arith.constant 0.000000e+00 : f32
      %82 = vector.broadcast %cst_24 : f32 to vector<16x8xf32>
      %83 = arith.maximumf %81, %82 : vector<16x8xf32>
      %c0_25 = arith.constant 0 : index
      %84 = arith.index_cast %1 : i32 to index
      %c8_26 = arith.constant 8 : index
      %85 = vector.load %arg14[%c0_25, %84, %c8_26] : memref<2x64x16xf32, #tpu.memory_space<vmem>>, vector<1x16x8xf32>
      %86 = vector.shape_cast %85 : vector<1x16x8xf32> to vector<16x8xf32>
      %87 = vector.shape_cast %83 : vector<16x8xf32> to vector<1x16x8xf32>
      tpu.vector_store %arg14[%c0_25, %84, %c8_26], %87 {strides = array<i32>} : memref<2x64x16xf32, #tpu.memory_space<vmem>>, vector<1x16x8xf32>,
    } else {
    }
    %c1_i32 = arith.constant 1 : i32
    %8 = arith.cmpi eq, %arg0, %c1_i32 : i32
    %9 = arith.extui %8 : i1 to i32
    %c0_i32_2 = arith.constant 0 : i32
    %10 = arith.cmpi ne, %9, %c0_i32_2 : i32
    scf.if %10 {
      %c0_i32_5 = arith.constant 0 : i32
      %16 = arith.cmpi eq, %arg1, %c0_i32_5 : i32
      %17 = arith.extui %16 : i1 to i32
      %c0_i32_6 = arith.constant 0 : i32
      %18 = arith.cmpi ne, %17, %c0_i32_6 : i32
      scf.if %18 {
        %c0_27 = arith.constant 0 : index
        %c0_28 = arith.constant 0 : index
        %c0_29 = arith.constant 0 : index
        %88 = vector.load %arg14[%c0_27, %c0_28, %c0_29] : memref<2x64x16xf32, #tpu.memory_space<vmem>>, vector<1x64x16xf32>
        %89 = vector.shape_cast %88 : vector<1x64x16xf32> to vector<64x16xf32>
        %90 = arith.truncf %89 : vector<64x16xf32> to vector<64x16xbf16>
        %c0_30 = arith.constant 0 : index
        %c0_31 = arith.constant 0 : index
        %91 = vector.load %arg7[%c0_30, %c0_31] : memref<16x20xbf16, #tpu.memory_space<vmem>>, vector<16x20xbf16>
        %cst_32 = arith.constant dense<0.000000e+00> : vector<64x20xf32>
        %92 = tpu.matmul %90, %91, %cst_32 {dimension_numbers = #tpu.dot_dimension_numbers<[1], [0], [0], [1], [0, 0, 1, 1], [], []>} : vector<64x16xbf16>, vector<16x20xbf16>, vector<64x20xf32> -> vector<64x20xf32>
        %c0_33 = arith.constant 0 : index
        %c0_34 = arith.constant 0 : index
        %93 = vector.load %arg15[%c0_33, %c0_34] : memref<64x20xf32, #tpu.memory_space<vmem>>, vector<64x20xf32>
        tpu.vector_store %arg15[%c0_33, %c0_34], %92 {strides = array<i32>} : memref<64x20xf32, #tpu.memory_space<vmem>>, vector<64x20xf32>,
        %94 = vector.extract_strided_slice %92 {offsets = [0, 18], sizes = [64, 2], strides = [1, 1]} : vector<64x20xf32> to vector<64x2xf32>
        %95 = tpu.transpose %94, [1, 0] : vector<64x2xf32> -> vector<2x64xf32>
        %c0_35 = arith.constant 0 : index
        %c0_36 = arith.constant 0 : index
        %96 = vector.load %arg16[%c0_35, %c0_36] : memref<2x64xf32, #tpu.memory_space<vmem>>, vector<2x64xf32>
        tpu.vector_store %arg16[%c0_35, %c0_36], %95 {strides = array<i32>} : memref<2x64xf32, #tpu.memory_space<vmem>>, vector<2x64xf32>,
      } else {
      }
      %c0_7 = arith.constant 0 : index
      %c0_8 = arith.constant 0 : index
      %19 = vector.load %arg15[%c0_7, %c0_8] : memref<64x20xf32, #tpu.memory_space<vmem>>, vector<64x20xf32>
      %20 = arith.index_cast %1 : i32 to index
      %c16 = arith.constant 16 : index
      %21 = vector.load %arg15[%20, %c16] : memref<64x20xf32, #tpu.memory_space<vmem>>, vector<16x2xf32>
      %22 = vector.extract_strided_slice %21 {offsets = [0, 0], sizes = [16, 1], strides = [1, 1]} : vector<16x2xf32> to vector<16x1xf32>
      %c0_9 = arith.constant 0 : index
      %c0_10 = arith.constant 0 : index
      %23 = vector.load %arg16[%c0_9, %c0_10] : memref<2x64xf32, #tpu.memory_space<vmem>>, vector<1x64xf32>
      %24 = vector.broadcast %22 : vector<16x1xf32> to vector<16x64xf32>
      %25 = vector.broadcast %23 : vector<1x64xf32> to vector<16x64xf32>
      %26 = arith.addf %24, %25 : vector<16x64xf32>
      %cst_11 = arith.constant 2.000000e-01 : f32
      %27 = vector.broadcast %cst_11 : f32 to vector<16x64xf32>
      %28 = arith.mulf %27, %26 : vector<16x64xf32>
      %29 = arith.maximumf %26, %28 : vector<16x64xf32>
      %30 = arith.addf %29, %3 : vector<16x64xf32>
      %cst_12 = arith.constant dense<0xFF800000> : vector<16xf32>
      %31 = vector.multi_reduction <maximumf>, %30, %cst_12 [1] : vector<16x64xf32> to vector<16xf32>
      %32 = vector.shape_cast %31 : vector<16xf32> to vector<16x1xf32>
      %33 = vector.broadcast %32 : vector<16x1xf32> to vector<16x64xf32>
      %34 = arith.subf %30, %33 : vector<16x64xf32>
      %35 = math.exp %34 : vector<16x64xf32>
      %36 = vector.extract_strided_slice %19 {offsets = [0, 0], sizes = [64, 8], strides = [1, 1]} : vector<64x20xf32> to vector<64x8xf32>
      %37 = tpu.concatenate %36, %4 in 1 : vector<64x8xf32>, vector<64x1xf32> -> vector<64x9xf32>
      %38 = arith.truncf %35 : vector<16x64xf32> to vector<16x64xbf16>
      %39 = arith.truncf %37 : vector<64x9xf32> to vector<64x9xbf16>
      %cst_13 = arith.constant dense<0.000000e+00> : vector<16x9xf32>
      %40 = tpu.matmul %38, %39, %cst_13 {dimension_numbers = #tpu.dot_dimension_numbers<[1], [0], [0], [1], [0, 0, 1, 1], [], []>} : vector<16x64xbf16>, vector<64x9xbf16>, vector<16x9xf32> -> vector<16x9xf32>
      %41 = vector.extract_strided_slice %40 {offsets = [0, 0], sizes = [16, 8], strides = [1, 1]} : vector<16x9xf32> to vector<16x8xf32>
      %42 = vector.extract_strided_slice %40 {offsets = [0, 8], sizes = [16, 1], strides = [1, 1]} : vector<16x9xf32> to vector<16x1xf32>
      %43 = tpu.reciprocal %42 {approx = true} : vector<16x1xf32> -> vector<16x1xf32>
      %44 = vector.broadcast %43 : vector<16x1xf32> to vector<16x8xf32>
      %45 = arith.mulf %41, %44 : vector<16x8xf32>
      %c0_14 = arith.constant 0 : index
      %c0_15 = arith.constant 0 : index
      %46 = vector.load %arg8[%c0_14, %c0_15] : memref<1x16xf32, #tpu.memory_space<vmem>>, vector<1x8xf32>
      %47 = vector.broadcast %46 : vector<1x8xf32> to vector<16x8xf32>
      %48 = arith.addf %45, %47 : vector<16x8xf32>
      %cst_16 = arith.constant 0.000000e+00 : f32
      %49 = vector.broadcast %cst_16 : f32 to vector<16x8xf32>
      %50 = arith.maximumf %48, %49 : vector<16x8xf32>
      %c1 = arith.constant 1 : index
      %51 = arith.index_cast %1 : i32 to index
      %c0_17 = arith.constant 0 : index
      %52 = vector.load %arg14[%c1, %51, %c0_17] : memref<2x64x16xf32, #tpu.memory_space<vmem>>, vector<1x16x8xf32>
      %53 = vector.shape_cast %52 : vector<1x16x8xf32> to vector<16x8xf32>
      %54 = vector.shape_cast %50 : vector<16x8xf32> to vector<1x16x8xf32>
      tpu.vector_store %arg14[%c1, %51, %c0_17], %54 {strides = array<i32>} : memref<2x64x16xf32, #tpu.memory_space<vmem>>, vector<1x16x8xf32>,
      %55 = vector.extract_strided_slice %21 {offsets = [0, 1], sizes = [16, 1], strides = [1, 1]} : vector<16x2xf32> to vector<16x1xf32>
      %c1_18 = arith.constant 1 : index
      %c0_19 = arith.constant 0 : index
      %56 = vector.load %arg16[%c1_18, %c0_19] : memref<2x64xf32, #tpu.memory_space<vmem>>, vector<1x64xf32>
      %57 = vector.broadcast %55 : vector<16x1xf32> to vector<16x64xf32>
      %58 = vector.broadcast %56 : vector<1x64xf32> to vector<16x64xf32>
      %59 = arith.addf %57, %58 : vector<16x64xf32>
      %cst_20 = arith.constant 2.000000e-01 : f32
      %60 = vector.broadcast %cst_20 : f32 to vector<16x64xf32>
      %61 = arith.mulf %60, %59 : vector<16x64xf32>
      %62 = arith.maximumf %59, %61 : vector<16x64xf32>
      %63 = arith.addf %62, %3 : vector<16x64xf32>
      %cst_21 = arith.constant dense<0xFF800000> : vector<16xf32>
      %64 = vector.multi_reduction <maximumf>, %63, %cst_21 [1] : vector<16x64xf32> to vector<16xf32>
      %65 = vector.shape_cast %64 : vector<16xf32> to vector<16x1xf32>
      %66 = vector.broadcast %65 : vector<16x1xf32> to vector<16x64xf32>
      %67 = arith.subf %63, %66 : vector<16x64xf32>
      %68 = math.exp %67 : vector<16x64xf32>
      %69 = vector.extract_strided_slice %19 {offsets = [0, 8], sizes = [64, 8], strides = [1, 1]} : vector<64x20xf32> to vector<64x8xf32>
      %70 = tpu.concatenate %69, %4 in 1 : vector<64x8xf32>, vector<64x1xf32> -> vector<64x9xf32>
      %71 = arith.truncf %68 : vector<16x64xf32> to vector<16x64xbf16>
      %72 = arith.truncf %70 : vector<64x9xf32> to vector<64x9xbf16>
      %cst_22 = arith.constant dense<0.000000e+00> : vector<16x9xf32>
      %73 = tpu.matmul %71, %72, %cst_22 {dimension_numbers = #tpu.dot_dimension_numbers<[1], [0], [0], [1], [0, 0, 1, 1], [], []>} : vector<16x64xbf16>, vector<64x9xbf16>, vector<16x9xf32> -> vector<16x9xf32>
      %74 = vector.extract_strided_slice %73 {offsets = [0, 0], sizes = [16, 8], strides = [1, 1]} : vector<16x9xf32> to vector<16x8xf32>
      %75 = vector.extract_strided_slice %73 {offsets = [0, 8], sizes = [16, 1], strides = [1, 1]} : vector<16x9xf32> to vector<16x1xf32>
      %76 = tpu.reciprocal %75 {approx = true} : vector<16x1xf32> -> vector<16x1xf32>
      %77 = vector.broadcast %76 : vector<16x1xf32> to vector<16x8xf32>
      %78 = arith.mulf %74, %77 : vector<16x8xf32>
      %c0_23 = arith.constant 0 : index
      %c8 = arith.constant 8 : index
      %79 = vector.load %arg8[%c0_23, %c8] : memref<1x16xf32, #tpu.memory_space<vmem>>, vector<1x8xf32>
      %80 = vector.broadcast %79 : vector<1x8xf32> to vector<16x8xf32>
      %81 = arith.addf %78, %80 : vector<16x8xf32>
      %cst_24 = arith.constant 0.000000e+00 : f32
      %82 = vector.broadcast %cst_24 : f32 to vector<16x8xf32>
      %83 = arith.maximumf %81, %82 : vector<16x8xf32>
      %c1_25 = arith.constant 1 : index
      %84 = arith.index_cast %1 : i32 to index
      %c8_26 = arith.constant 8 : index
      %85 = vector.load %arg14[%c1_25, %84, %c8_26] : memref<2x64x16xf32, #tpu.memory_space<vmem>>, vector<1x16x8xf32>
      %86 = vector.shape_cast %85 : vector<1x16x8xf32> to vector<16x8xf32>
      %87 = vector.shape_cast %83 : vector<16x8xf32> to vector<1x16x8xf32>
      tpu.vector_store %arg14[%c1_25, %84, %c8_26], %87 {strides = array<i32>} : memref<2x64x16xf32, #tpu.memory_space<vmem>>, vector<1x16x8xf32>,
    } else {
    }
    %c1_i32_3 = arith.constant 1 : i32
    %11 = arith.cmpi eq, %arg0, %c1_i32_3 : i32
    %c3_i32 = arith.constant 3 : i32
    %12 = arith.cmpi eq, %arg1, %c3_i32 : i32
    %13 = arith.andi %11, %12 : i1
    %14 = arith.extui %13 : i1 to i32
    %c0_i32_4 = arith.constant 0 : i32
    %15 = arith.cmpi ne, %14, %c0_i32_4 : i32
    scf.if %15 {
      %c1 = arith.constant 1 : index
      %c0_5 = arith.constant 0 : index
      %c0_6 = arith.constant 0 : index
      %16 = vector.load %arg14[%c1, %c0_5, %c0_6] : memref<2x64x16xf32, #tpu.memory_space<vmem>>, vector<1x64x16xf32>
      %17 = vector.shape_cast %16 : vector<1x64x16xf32> to vector<64x16xf32>
      %c0_7 = arith.constant 0 : index
      %c0_8 = arith.constant 0 : index
      %18 = vector.load %arg4[%c0_7, %c0_8] : memref<2x64xf32, #tpu.memory_space<vmem>>, vector<2x64xf32>
      %cst_9 = arith.constant dense<0.000000e+00> : vector<2x16xf32>
      %19 = tpu.matmul %18, %17, %cst_9 {dimension_numbers = #tpu.dot_dimension_numbers<[1], [0], [0], [1], [0, 0, 1, 1], [], []>} : vector<2x64xf32>, vector<64x16xf32>, vector<2x16xf32> -> vector<2x16xf32>
      %c0_10 = arith.constant 0 : index
      %c0_11 = arith.constant 0 : index
      %20 = vector.load %arg9[%c0_10, %c0_11] : memref<16x128xf32, #tpu.memory_space<vmem>>, vector<16x128xf32>
      %cst_12 = arith.constant dense<0.000000e+00> : vector<2x128xf32>
      %21 = tpu.matmul %19, %20, %cst_12 {dimension_numbers = #tpu.dot_dimension_numbers<[1], [0], [0], [1], [0, 0, 1, 1], [], []>} : vector<2x16xf32>, vector<16x128xf32>, vector<2x128xf32> -> vector<2x128xf32>
      %c0_13 = arith.constant 0 : index
      %c0_14 = arith.constant 0 : index
      %22 = vector.load %arg10[%c0_13, %c0_14] : memref<1x128xf32, #tpu.memory_space<vmem>>, vector<1x128xf32>
      %23 = vector.broadcast %22 : vector<1x128xf32> to vector<2x128xf32>
      %24 = arith.addf %21, %23 : vector<2x128xf32>
      %cst_15 = arith.constant 0.000000e+00 : f32
      %25 = vector.broadcast %cst_15 : f32 to vector<2x128xf32>
      %26 = arith.maximumf %24, %25 : vector<2x128xf32>
      %c0_16 = arith.constant 0 : index
      %c0_17 = arith.constant 0 : index
      %27 = vector.load %arg11[%c0_16, %c0_17] : memref<128x1xf32, #tpu.memory_space<vmem>>, vector<128x1xf32>
      %cst_18 = arith.constant dense<0.000000e+00> : vector<2x1xf32>
      %28 = tpu.matmul %26, %27, %cst_18 {dimension_numbers = #tpu.dot_dimension_numbers<[1], [0], [0], [1], [0, 0, 1, 1], [], []>} : vector<2x128xf32>, vector<128x1xf32>, vector<2x1xf32> -> vector<2x1xf32>
      %c0_19 = arith.constant 0 : index
      %c0_20 = arith.constant 0 : index
      %29 = vector.load %arg12[%c0_19, %c0_20] : memref<1x1xf32, #tpu.memory_space<vmem>>, vector<1x1xf32>
      %30 = vector.broadcast %29 : vector<1x1xf32> to vector<2x1xf32>
      %31 = arith.addf %28, %30 : vector<2x1xf32>
      %c0_21 = arith.constant 0 : index
      %c0_22 = arith.constant 0 : index
      %32 = vector.load %arg13[%c0_21, %c0_22] : memref<2x1xf32, #tpu.memory_space<vmem>>, vector<2x1xf32>
      tpu.vector_store %arg13[%c0_21, %c0_22], %31 {strides = array<i32>} : memref<2x1xf32, #tpu.memory_space<vmem>>, vector<2x1xf32>,
    } else {
    }
    return
  }
  func.func @transform_0(%arg0: i32, %arg1: i32) -> (i32, i32) {
    %c0_i32 = arith.constant 0 : i32
    %c0_i32_0 = arith.constant 0 : i32
    %c0_i32_1 = arith.constant 0 : i32
    return %c0_i32, %c0_i32_0 : i32, i32
  }
  func.func @transform_1(%arg0: i32, %arg1: i32) -> (i32, i32) {
    %c0_i32 = arith.constant 0 : i32
    %c0_i32_0 = arith.constant 0 : i32
    return %arg1, %c0_i32 : i32, i32
  }
  func.func @transform_2(%arg0: i32, %arg1: i32) -> (i32, i32) {
    %c0_i32 = arith.constant 0 : i32
    %c0_i32_0 = arith.constant 0 : i32
    %c0_i32_1 = arith.constant 0 : i32
    return %c0_i32, %c0_i32_0 : i32, i32
  }
  func.func @transform_3(%arg0: i32, %arg1: i32) -> (i32, i32) {
    %c0_i32 = arith.constant 0 : i32
    %c0_i32_0 = arith.constant 0 : i32
    %c0_i32_1 = arith.constant 0 : i32
    return %c0_i32, %c0_i32_0 : i32, i32
  }
  func.func @transform_4(%arg0: i32, %arg1: i32) -> (i32, i32) {
    %c0_i32 = arith.constant 0 : i32
    %c0_i32_0 = arith.constant 0 : i32
    %c0_i32_1 = arith.constant 0 : i32
    return %c0_i32, %c0_i32_0 : i32, i32
  }
  func.func @transform_5(%arg0: i32, %arg1: i32) -> (i32, i32) {
    %c0_i32 = arith.constant 0 : i32
    %c0_i32_0 = arith.constant 0 : i32
    %c0_i32_1 = arith.constant 0 : i32
    return %c0_i32, %c0_i32_0 : i32, i32
  }
  func.func @transform_6(%arg0: i32, %arg1: i32) -> (i32, i32) {
    %c0_i32 = arith.constant 0 : i32
    %c0_i32_0 = arith.constant 0 : i32
    %c0_i32_1 = arith.constant 0 : i32
    return %c0_i32, %c0_i32_0 : i32, i32
  }
  func.func @transform_7(%arg0: i32, %arg1: i32) -> (i32, i32) {
    %c0_i32 = arith.constant 0 : i32
    %c0_i32_0 = arith.constant 0 : i32
    %c0_i32_1 = arith.constant 0 : i32
    return %c0_i32, %c0_i32_0 : i32, i32
  }
  func.func @transform_8(%arg0: i32, %arg1: i32) -> (i32, i32) {
    %c0_i32 = arith.constant 0 : i32
    %c0_i32_0 = arith.constant 0 : i32
    %c0_i32_1 = arith.constant 0 : i32
    return %c0_i32, %c0_i32_0 : i32, i32
  }
  func.func @transform_9(%arg0: i32, %arg1: i32) -> (i32, i32) {
    %c0_i32 = arith.constant 0 : i32
    %c0_i32_0 = arith.constant 0 : i32
    %c0_i32_1 = arith.constant 0 : i32
    return %c0_i32, %c0_i32_0 : i32, i32
  }
  func.func @transform_10(%arg0: i32, %arg1: i32) -> (i32, i32) {
    %c0_i32 = arith.constant 0 : i32
    %c0_i32_0 = arith.constant 0 : i32
    %c0_i32_1 = arith.constant 0 : i32
    return %c0_i32, %c0_i32_0 : i32, i32
  }
  func.func @transform_11(%arg0: i32, %arg1: i32) -> (i32, i32) {
    %c0_i32 = arith.constant 0 : i32
    %c0_i32_0 = arith.constant 0 : i32
    %c0_i32_1 = arith.constant 0 : i32
    return %c0_i32, %c0_i32_0 : i32, i32
  }
}

</mosaic_0001>

<llo_original>
// kernel: tpu_custom_call.1
$region0: #{tpu_custom_call.1}
  #allocation0 [shape = 'u32[]', space=smem, size = 0x4, offset = 0x4, fixed_abs, tag = 'smem constant byte address 0x4 - core index']
  #allocation1 [shape = 'u32[144,128]{1,0:T(1,128)}', space=vmem, size = 0x12000, scoped, tag = 'internal scratch']
  #allocation2 [shape = 'f32[2,64,16]{2,1,0:T(8,128)}', space=vmem, size = 0x10000, scoped, tag = 'scratch operand']
  #allocation3 [shape = 'f32[64,20]{1,0:T(8,128)}', space=vmem, size = 0x8000, scoped, tag = 'scratch operand']
  #allocation4 [shape = 'f32[2,64]{1,0:T(2,128)}', space=vmem, size = 0x400, scoped, tag = 'scratch operand']
  #allocation5 [shape = 'f32[1,1]{1,0:T(1,128)S(1)}', space=vmem, size = 0x200, scoped, tag = 'scoped memory for tpu_custom_call.1']
  %s0 = inlined_call_operand.vmem [shape: f32[64,8], index: 0, kind: input, shape index: {}]
  %s1 = inlined_call_operand.vmem [shape: bf16[64,64], index: 1, kind: input, shape index: {}]
  %s2 = inlined_call_operand.vmem [shape: f32[2,64], index: 2, kind: input, shape index: {}]
  %s3 = inlined_call_operand.vmem [shape: bf16[8,20], index: 3, kind: input, shape index: {}]
  %s4 = inlined_call_operand.vmem [shape: f32[1,16], index: 4, kind: input, shape index: {}]
  %s5 = inlined_call_operand.vmem [shape: bf16[16,20], index: 5, kind: input, shape index: {}]
  %s6 = inlined_call_operand.vmem [shape: f32[1,16], index: 6, kind: input, shape index: {}]
  %s7 = inlined_call_operand.vmem [shape: f32[16,128], index: 7, kind: input, shape index: {}]
  %s8 = inlined_call_operand.vmem [shape: f32[1,128], index: 8, kind: input, shape index: {}]
  %s9 = inlined_call_operand.vmem [shape: f32[128,1], index: 9, kind: input, shape index: {}]
  %s10 = inlined_call_operand.<no memory space> [shape: f32[1,1], index: 10, kind: input, shape index: {}]
  %s11 = inlined_call_operand.vmem [shape: f32[2,1], index: 11, kind: output, shape index: {}]
  %s12 = sld [smem:[#allocation0]]
  $region97: #{tpu_custom_call.1} parent=0
    _
  %s14 = ssub.s32 1, %s12
  %s15 = scalar_select 0, %s14, %s12
  %v16 = vstv %s10
  %17 = vst [vmem:[#allocation5] sm:$0x1] %v16
  loop: start=0, step=1, limit=10
  $region2: #{tpu_custom_call.1} parent=0 // loop_pre_header
    _
  $region3: #{tpu_custom_call.1} parent=0 // loop_header
    %s19 = sphi 0, %s23
    %p20 = scmp.ge.s32.totalorder %s19, 10
    %s26 = sphi 0, %s38
    %s27 = sphi 0, %s34
    %s28 = sphi 0, %s26
    %s29 = sphi 0, %s27
    %s30 = sphi 0, %s28
    %s31 = sphi 0, %s29
    %s39 = sphi 0, %s39
    %s41 = sphi 0, %s39
    %s42 = sphi 0, %s41
    %s56 = sphi 0, %s42
    %s62 = sphi 0, %s64
    %s65 = sphi 0, %s62
    %s66 = sphi 0, %s65
    %s82 = sphi 0, %s66
    %s86 = sphi 0, %s86
    %s88 = sphi 0, %s86
    %s89 = sphi 0, %s88
    %s103 = sphi 0, %s89
    %s107 = sphi 0, %s107
    %s109 = sphi 0, %s107
    %s110 = sphi 0, %s109
    %s124 = sphi 0, %s110
    %s128 = sphi 0, %s128
    %s130 = sphi 0, %s128
    %s131 = sphi 0, %s130
    %s145 = sphi 0, %s131
    %s149 = sphi 0, %s149
    %s151 = sphi 0, %s149
    %s152 = sphi 0, %s151
    %s166 = sphi 0, %s152
    %s170 = sphi 0, %s170
    %s172 = sphi 0, %s170
    %s173 = sphi 0, %s172
    %s187 = sphi 0, %s173
    %s191 = sphi 0, %s191
    %s193 = sphi 0, %s191
    %s194 = sphi 0, %s193
    %s208 = sphi 0, %s194
    %s212 = sphi 0, %s212
    %s214 = sphi 0, %s212
    %s215 = sphi 0, %s214
    %s229 = sphi 0, %s215
    %s233 = sphi 0, %s233
    %s235 = sphi 0, %s233
    %s236 = sphi 0, %s235
    %s250 = sphi 0, %s236
    %s254 = sphi 0, %s254
    %s256 = sphi 0, %s254
    %s257 = sphi 0, %s256
    %s271 = sphi 0, %s257
    %s275 = sphi 0, %s275
    %s277 = sphi 0, %s275
    %s278 = sphi 0, %s277
    %s292 = sphi 0, %s278
  $region4: #{tpu_custom_call.1} parent=0 // loop_header_branch
    %22 = sbr.rel (%p20) target = $region8
  $region5: #{tpu_custom_call.1} parent=0 // loop_body
    %s24 = ssub.s32 %s19, 1
    %s25 = ssub.s32 %s19, 2
    %s32 = sadd.s32 1, %s27
    %p33 = scmp.ge.s32.totalorder %s32, 4
    %s34 = scalar_select %p33, 0, %s32
    %s35 = sadd.s32 1, %s26
    %s36 = scalar_select %p33, %s35, %s26
    %p37 = scmp.ge.s32.totalorder %s36, 2
    %s38 = scalar_select %p37, 0, %s36
    %s40 = sadd.s32 %s39, 1
    %p43 = scmp.eq.s32.totalorder %s19, 7
    %p44 = scmp.ne.s32.totalorder %s39, %s41
    %p45 = scmp.eq.s32.totalorder %s19, 0
    %p46 = por %p44, %p45
    %p47 = scmp.ne.s32.totalorder %s39, %s41
    %p48 = scmp.eq.s32.totalorder %s24, 7
    %p49 = por %p47, %p48
    %p50 = scmp.ne.s32.totalorder %s41, %s42
    %p51 = scmp.eq.s32.totalorder %s24, 0
    %p52 = por %p50, %p51
    %p53 = scmp.ne.s32.totalorder %s41, %s42
    %p54 = scmp.eq.s32.totalorder %s25, 7
    %p55 = por %p53, %p54
    %p57 = scmp.ne.s32.totalorder %s42, %s56
    %p58 = scmp.eq.s32.totalorder %s25, 0
    %p59 = por %p57, %p58
    %s60 = ssub.s32 %s27, %s34
    %p61 = scmp.eq.s32.totalorder %s60, 0
    %s63 = sadd.s32 %s62, 1
    %s64 = scalar_select %p61, %s62, %s63
    %p67 = pneg %p61
    %p68 = scmp.eq.s32.totalorder %s19, 7
    %p69 = por %p67, %p68
    %p70 = scmp.ne.s32.totalorder %s62, %s65
    %p71 = scmp.eq.s32.totalorder %s19, 0
    %p72 = por %p70, %p71
    %p73 = scmp.ne.s32.totalorder %s62, %s65
    %p74 = scmp.eq.s32.totalorder %s24, 7
    %p75 = por %p73, %p74
    %p76 = scmp.ne.s32.totalorder %s65, %s66
    %p77 = scmp.eq.s32.totalorder %s24, 0
    %p78 = por %p76, %p77
    %p79 = scmp.ne.s32.totalorder %s65, %s66
    %p80 = scmp.eq.s32.totalorder %s25, 7
    %p81 = por %p79, %p80
    %p83 = scmp.ne.s32.totalorder %s66, %s82
    %p84 = scmp.eq.s32.totalorder %s25, 0
    %p85 = por %p83, %p84
    %s87 = sadd.s32 %s86, 1
    %p90 = scmp.eq.s32.totalorder %s19, 7
    %p91 = scmp.ne.s32.totalorder %s86, %s88
    %p92 = scmp.eq.s32.totalorder %s19, 0
    %p93 = por %p91, %p92
    %p94 = scmp.ne.s32.totalorder %s86, %s88
    %p95 = scmp.eq.s32.totalorder %s24, 7
    %p96 = por %p94, %p95
    %p97 = scmp.ne.s32.totalorder %s88, %s89
    %p98 = scmp.eq.s32.totalorder %s24, 0
    %p99 = por %p97, %p98
    %p100 = scmp.ne.s32.totalorder %s88, %s89
    %p101 = scmp.eq.s32.totalorder %s25, 7
    %p102 = por %p100, %p101
    %p104 = scmp.ne.s32.totalorder %s89, %s103
    %p105 = scmp.eq.s32.totalorder %s25, 0
    %p106 = por %p104, %p105
    %s108 = sadd.s32 %s107, 1
    %p111 = scmp.eq.s32.totalorder %s19, 7
    %p112 = scmp.ne.s32.totalorder %s107, %s109
    %p113 = scmp.eq.s32.totalorder %s19, 0
    %p114 = por %p112, %p113
    %p115 = scmp.ne.s32.totalorder %s107, %s109
    %p116 = scmp.eq.s32.totalorder %s24, 7
    %p117 = por %p115, %p116
    %p118 = scmp.ne.s32.totalorder %s109, %s110
    %p119 = scmp.eq.s32.totalorder %s24, 0
    %p120 = por %p118, %p119
    %p121 = scmp.ne.s32.totalorder %s109, %s110
    %p122 = scmp.eq.s32.totalorder %s25, 7
    %p123 = por %p121, %p122
    %p125 = scmp.ne.s32.totalorder %s110, %s124
    %p126 = scmp.eq.s32.totalorder %s25, 0
    %p127 = por %p125, %p126
    %s129 = sadd.s32 %s128, 1
    %p132 = scmp.eq.s32.totalorder %s19, 7
    %p133 = scmp.ne.s32.totalorder %s128, %s130
    %p134 = scmp.eq.s32.totalorder %s19, 0
    %p135 = por %p133, %p134
    %p136 = scmp.ne.s32.totalorder %s128, %s130
    %p137 = scmp.eq.s32.totalorder %s24, 7
    %p138 = por %p136, %p137
    %p139 = scmp.ne.s32.totalorder %s130, %s131
    %p140 = scmp.eq.s32.totalorder %s24, 0
    %p141 = por %p139, %p140
    %p142 = scmp.ne.s32.totalorder %s130, %s131
    %p143 = scmp.eq.s32.totalorder %s25, 7
    %p144 = por %p142, %p143
    %p146 = scmp.ne.s32.totalorder %s131, %s145
    %p147 = scmp.eq.s32.totalorder %s25, 0
    %p148 = por %p146, %p147
    %s150 = sadd.s32 %s149, 1
    %p153 = scmp.eq.s32.totalorder %s19, 7
    %p154 = scmp.ne.s32.totalorder %s149, %s151
    %p155 = scmp.eq.s32.totalorder %s19, 0
    %p156 = por %p154, %p155
    %p157 = scmp.ne.s32.totalorder %s149, %s151
    %p158 = scmp.eq.s32.totalorder %s24, 7
    %p159 = por %p157, %p158
    %p160 = scmp.ne.s32.totalorder %s151, %s152
    %p161 = scmp.eq.s32.totalorder %s24, 0
    %p162 = por %p160, %p161
    %p163 = scmp.ne.s32.totalorder %s151, %s152
    %p164 = scmp.eq.s32.totalorder %s25, 7
    %p165 = por %p163, %p164
    %p167 = scmp.ne.s32.totalorder %s152, %s166
    %p168 = scmp.eq.s32.totalorder %s25, 0
    %p169 = por %p167, %p168
    %s171 = sadd.s32 %s170, 1
    %p174 = scmp.eq.s32.totalorder %s19, 7
    %p175 = scmp.ne.s32.totalorder %s170, %s172
    %p176 = scmp.eq.s32.totalorder %s19, 0
    %p177 = por %p175, %p176
    %p178 = scmp.ne.s32.totalorder %s170, %s172
    %p179 = scmp.eq.s32.totalorder %s24, 7
    %p180 = por %p178, %p179
    %p181 = scmp.ne.s32.totalorder %s172, %s173
    %p182 = scmp.eq.s32.totalorder %s24, 0
    %p183 = por %p181, %p182
    %p184 = scmp.ne.s32.totalorder %s172, %s173
    %p185 = scmp.eq.s32.totalorder %s25, 7
    %p186 = por %p184, %p185
    %p188 = scmp.ne.s32.totalorder %s173, %s187
    %p189 = scmp.eq.s32.totalorder %s25, 0
    %p190 = por %p188, %p189
    %s192 = sadd.s32 %s191, 1
    %p195 = scmp.eq.s32.totalorder %s19, 7
    %p196 = scmp.ne.s32.totalorder %s191, %s193
    %p197 = scmp.eq.s32.totalorder %s19, 0
    %p198 = por %p196, %p197
    %p199 = scmp.ne.s32.totalorder %s191, %s193
    %p200 = scmp.eq.s32.totalorder %s24, 7
    %p201 = por %p199, %p200
    %p202 = scmp.ne.s32.totalorder %s193, %s194
    %p203 = scmp.eq.s32.totalorder %s24, 0
    %p204 = por %p202, %p203
    %p205 = scmp.ne.s32.totalorder %s193, %s194
    %p206 = scmp.eq.s32.totalorder %s25, 7
    %p207 = por %p205, %p206
    %p209 = scmp.ne.s32.totalorder %s194, %s208
    %p210 = scmp.eq.s32.totalorder %s25, 0
    %p211 = por %p209, %p210
    %s213 = sadd.s32 %s212, 1
    %p216 = scmp.eq.s32.totalorder %s19, 7
    %p217 = scmp.ne.s32.totalorder %s212, %s214
    %p218 = scmp.eq.s32.totalorder %s19, 0
    %p219 = por %p217, %p218
    %p220 = scmp.ne.s32.totalorder %s212, %s214
    %p221 = scmp.eq.s32.totalorder %s24, 7
    %p222 = por %p220, %p221
    %p223 = scmp.ne.s32.totalorder %s214, %s215
    %p224 = scmp.eq.s32.totalorder %s24, 0
    %p225 = por %p223, %p224
    %p226 = scmp.ne.s32.totalorder %s214, %s215
    %p227 = scmp.eq.s32.totalorder %s25, 7
    %p228 = por %p226, %p227
    %p230 = scmp.ne.s32.totalorder %s215, %s229
    %p231 = scmp.eq.s32.totalorder %s25, 0
    %p232 = por %p230, %p231
    %s234 = sadd.s32 %s233, 1
    %p237 = scmp.eq.s32.totalorder %s19, 7
    %p238 = scmp.ne.s32.totalorder %s233, %s235
    %p239 = scmp.eq.s32.totalorder %s19, 0
    %p240 = por %p238, %p239
    %p241 = scmp.ne.s32.totalorder %s233, %s235
    %p242 = scmp.eq.s32.totalorder %s24, 7
    %p243 = por %p241, %p242
    %p244 = scmp.ne.s32.totalorder %s235, %s236
    %p245 = scmp.eq.s32.totalorder %s24, 0
    %p246 = por %p244, %p245
    %p247 = scmp.ne.s32.totalorder %s235, %s236
    %p248 = scmp.eq.s32.totalorder %s25, 7
    %p249 = por %p247, %p248
    %p251 = scmp.ne.s32.totalorder %s236, %s250
    %p252 = scmp.eq.s32.totalorder %s25, 0
    %p253 = por %p251, %p252
    %s255 = sadd.s32 %s254, 1
    %p258 = scmp.eq.s32.totalorder %s19, 7
    %p259 = scmp.ne.s32.totalorder %s254, %s256
    %p260 = scmp.eq.s32.totalorder %s19, 0
    %p261 = por %p259, %p260
    %p262 = scmp.ne.s32.totalorder %s254, %s256
    %p263 = scmp.eq.s32.totalorder %s24, 7
    %p264 = por %p262, %p263
    %p265 = scmp.ne.s32.totalorder %s256, %s257
    %p266 = scmp.eq.s32.totalorder %s24, 0
    %p267 = por %p265, %p266
    %p268 = scmp.ne.s32.totalorder %s256, %s257
    %p269 = scmp.eq.s32.totalorder %s25, 7
    %p270 = por %p268, %p269
    %p272 = scmp.ne.s32.totalorder %s257, %s271
    %p273 = scmp.eq.s32.totalorder %s25, 0
    %p274 = por %p272, %p273
    %s276 = sadd.s32 %s275, 1
    %p279 = scmp.eq.s32.totalorder %s19, 7
    %p280 = scmp.ne.s32.totalorder %s275, %s277
    %p281 = scmp.eq.s32.totalorder %s19, 0
    %p282 = por %p280, %p281
    %p283 = scmp.ne.s32.totalorder %s275, %s277
    %p284 = scmp.eq.s32.totalorder %s24, 7
    %p285 = por %p283, %p284
    %p286 = scmp.ne.s32.totalorder %s277, %s278
    %p287 = scmp.eq.s32.totalorder %s24, 0
    %p288 = por %p286, %p287
    %p289 = scmp.ne.s32.totalorder %s277, %s278
    %p290 = scmp.eq.s32.totalorder %s25, 7
    %p291 = por %p289, %p290
    %p293 = scmp.ne.s32.totalorder %s278, %s292
    %p294 = scmp.eq.s32.totalorder %s25, 0
    %p295 = por %p293, %p294
    %p296 = scmp.le.s32.totalorder 1, %s19
    %p297 = scmp.lt.s32.totalorder %s19, 9
    %p298 = pnand %p296, %p297
    %p299 = pneg %p298
    // Predicated region
    $region9: #{tpu_custom_call.1} parent=5 // pred_check
      _
    $region10: #{tpu_custom_call.1} parent=5 // pred_check_branch
      %301 = sbr.rel (%p298) target = $region12
    $region11: #{tpu_custom_call.1} parent=5 // pred_region
      %s302 = ssub.s32 %s19, 1
      // Predicated region
      $region13: #{tpu_custom_call.1} parent=11 // pred_check
        %p303 = pneg %p52
      $region14: #{tpu_custom_call.1} parent=11 // pred_check_branch
        %305 = sbr.rel (%p303) target = $region16
      $region15: #{tpu_custom_call.1} parent=11 // pred_region
        _
      $region16: #{tpu_custom_call.1} parent=11 // pred_fallthru
        _
      // Predicated region
      $region17: #{tpu_custom_call.1} parent=11 // pred_check
        %p306 = pneg %p99
      $region18: #{tpu_custom_call.1} parent=11 // pred_check_branch
        %308 = sbr.rel (%p306) target = $region20
      $region19: #{tpu_custom_call.1} parent=11 // pred_region
        _
      $region20: #{tpu_custom_call.1} parent=11 // pred_fallthru
        _
      // Predicated region
      $region21: #{tpu_custom_call.1} parent=11 // pred_check
        %p309 = pneg %p120
      $region22: #{tpu_custom_call.1} parent=11 // pred_check_branch
        %311 = sbr.rel (%p309) target = $region24
      $region23: #{tpu_custom_call.1} parent=11 // pred_region
        _
      $region24: #{tpu_custom_call.1} parent=11 // pred_fallthru
        _
      // Predicated region
      $region25: #{tpu_custom_call.1} parent=11 // pred_check
        %p312 = pneg %p141
      $region26: #{tpu_custom_call.1} parent=11 // pred_check_branch
        %314 = sbr.rel (%p312) target = $region28
      $region27: #{tpu_custom_call.1} parent=11 // pred_region
        _
      $region28: #{tpu_custom_call.1} parent=11 // pred_fallthru
        _
      // Predicated region
      $region29: #{tpu_custom_call.1} parent=11 // pred_check
        %p315 = pneg %p162
      $region30: #{tpu_custom_call.1} parent=11 // pred_check_branch
        %317 = sbr.rel (%p315) target = $region32
      $region31: #{tpu_custom_call.1} parent=11 // pred_region
        _
      $region32: #{tpu_custom_call.1} parent=11 // pred_fallthru
        _
      // Predicated region
      $region33: #{tpu_custom_call.1} parent=11 // pred_check
        %p318 = pneg %p183
      $region34: #{tpu_custom_call.1} parent=11 // pred_check_branch
        %320 = sbr.rel (%p318) target = $region36
      $region35: #{tpu_custom_call.1} parent=11 // pred_region
        _
      $region36: #{tpu_custom_call.1} parent=11 // pred_fallthru
        _
      // Predicated region
      $region37: #{tpu_custom_call.1} parent=11 // pred_check
        %p321 = pneg %p204
      $region38: #{tpu_custom_call.1} parent=11 // pred_check_branch
        %323 = sbr.rel (%p321) target = $region40
      $region39: #{tpu_custom_call.1} parent=11 // pred_region
        _
      $region40: #{tpu_custom_call.1} parent=11 // pred_fallthru
        _
      // Predicated region
      $region41: #{tpu_custom_call.1} parent=11 // pred_check
        %p324 = pneg %p225
      $region42: #{tpu_custom_call.1} parent=11 // pred_check_branch
        %326 = sbr.rel (%p324) target = $region44
      $region43: #{tpu_custom_call.1} parent=11 // pred_region
        _
      $region44: #{tpu_custom_call.1} parent=11 // pred_fallthru
        _
      // Predicated region
      $region45: #{tpu_custom_call.1} parent=11 // pred_check
        %p327 = pneg %p246
      $region46: #{tpu_custom_call.1} parent=11 // pred_check_branch
        %329 = sbr.rel (%p327) target = $region48
      $region47: #{tpu_custom_call.1} parent=11 // pred_region
        _
      $region48: #{tpu_custom_call.1} parent=11 // pred_fallthru
        _
      // Predicated region
      $region49: #{tpu_custom_call.1} parent=11 // pred_check
        %p330 = pneg %p267
      $region50: #{tpu_custom_call.1} parent=11 // pred_check_branch
        %332 = sbr.rel (%p330) target = $region52
      $region51: #{tpu_custom_call.1} parent=11 // pred_region
        _
      $region52: #{tpu_custom_call.1} parent=11 // pred_fallthru
        _
    $region12: #{tpu_custom_call.1} parent=5 // pred_fallthru
      _
    %p333 = scmp.lt.s32.totalorder %s19, 8
    // Predicated region
    $region53: #{tpu_custom_call.1} parent=5 // pred_check
      %p334 = pneg %p333
    $region54: #{tpu_custom_call.1} parent=5 // pred_check_branch
      %336 = sbr.rel (%p334) target = $region56
    $region55: #{tpu_custom_call.1} parent=5 // pred_region
      // Predicated region
      $region57: #{tpu_custom_call.1} parent=55 // pred_check
        %p337 = pneg %p72
      $region58: #{tpu_custom_call.1} parent=55 // pred_check_branch
        %339 = sbr.rel (%p337) target = $region60
      $region59: #{tpu_custom_call.1} parent=55 // pred_region
        %s340 = smul.u32 2, %s27
        %p341 = scmp.lt.s32.totalorder %s340, 7
        %s342 = scalar_select %p341, %s340, 7
        %s343 = smul.addr %s342, 4
        %s344 = scalar_lea.vmem %s1, %s343
        %s345 = smul.u32 2, %s27
      $region60: #{tpu_custom_call.1} parent=55 // pred_fallthru
        _
    $region56: #{tpu_custom_call.1} parent=5 // pred_fallthru
      _
    %p346 = scmp.le.s32.totalorder 1, %s19
    %p347 = scmp.lt.s32.totalorder %s19, 9
    %p348 = pnand %p346, %p347
    %p349 = pneg %p348
    // Predicated region
    $region61: #{tpu_custom_call.1} parent=5 // pred_check
      _
    $region62: #{tpu_custom_call.1} parent=5 // pred_check_branch
      %351 = sbr.rel (%p348) target = $region64
    $region63: #{tpu_custom_call.1} parent=5 // pred_region
      %s352 = ssub.s32 %s19, 1
      %p353 = pneg %p52
      %p354 = pneg %p49
      %s355 = smul.u32 2, %s29
      %p356 = scmp.lt.s32.totalorder %s355, 7
      %s357 = scalar_select %p356, %s355, 7
      %s358 = smul.addr %s357, 4
      %s359 = scalar_lea.vmem %s1, %s358
      %p360 = pneg %p78
      %p361 = pneg %p75
      %p362 = pneg %p99
      %p363 = pneg %p96
      %p364 = pneg %p120
      %p365 = pneg %p117
      %p366 = pneg %p141
      %p367 = pneg %p138
      %p368 = pneg %p162
      %p369 = pneg %p159
      %p370 = pneg %p183
      %p371 = pneg %p180
      %p372 = pneg %p204
      %p373 = pneg %p201
      %p374 = pneg %p225
      %p375 = pneg %p222
      %p376 = pneg %p246
      %p377 = pneg %p243
      %p378 = pneg %p267
      %p379 = pneg %p264
      %p380 = pneg %p288
      %p381 = pneg %p285
      %s382 = smul.u32 2, %s29
      %p383 = scmp.lt.s32.totalorder %s382, 7
      %s384 = scalar_select %p383, %s382, 7
      %s385 = smul.addr %s384, 4
      %s386 = scalar_lea.vmem %s1, %s385
      %s387 = smul.u32 2, %s29
      %s389 = smul.u32 %s29, 16
      %v390 = vld [vmem:[%s386] sm:$0xf]
      %v391 = vld [vmem:[%s386 + $0x4] sm:$0xf]
      %v392 = vunpack.c.l.bf16 %v390
      %v393 = vunpack.c.l.bf16 %v391
      %p394 = scmp.eq.s32.totalorder %s28, 0
      // Predicated region
      $region65: #{tpu_custom_call.1} parent=63 // pred_check
        %p395 = pneg %p394
      $region66: #{tpu_custom_call.1} parent=63 // pred_check_branch
        %397 = sbr.rel (%p395) target = $region68
      $region67: #{tpu_custom_call.1} parent=63 // pred_region
        %p398 = scmp.eq.s32.totalorder %s29, 0
        // Predicated region
        $region69: #{tpu_custom_call.1} parent=67 // pred_check
          %p399 = pneg %p398
        $region70: #{tpu_custom_call.1} parent=67 // pred_check_branch
          %401 = sbr.rel (%p399) target = $region72
        $region71: #{tpu_custom_call.1} parent=67 // pred_region
          %v402 = vld [vmem:[%s0] sm:$0xff]
          %v403 = vld [vmem:[%s0 + $0x8] sm:$0xff]
          %v404 = vld [vmem:[%s0 + $0x10] sm:$0xff]
          %v405 = vld [vmem:[%s0 + $0x18] sm:$0xff]
          %v406 = vld [vmem:[%s0 + $0x20] sm:$0xff]
          %v407 = vld [vmem:[%s0 + $0x28] sm:$0xff]
          %v408 = vld [vmem:[%s0 + $0x30] sm:$0xff]
          %v409 = vld [vmem:[%s0 + $0x38] sm:$0xff]
          %v410 = vpack.c.bf16 %v403, %v402
          %v411 = vpack.c.bf16 %v405, %v404
          %v412 = vpack.c.bf16 %v407, %v406
          %v413 = vpack.c.bf16 %v409, %v408
          %v414 = vld [vmem:[%s3] sm:$0xf]
          %vm415 = vcmask 64512
          %v417 = vsel %vm415, %v410, 0
          %v420 = vsel %vm415, %v411, 0
          %v423 = vsel %vm415, %v412, 0
          %v426 = vsel %vm415, %v413, 0
          %vm428 = vcmask 1043456
          %v430 = vsel %vm428, %v414, 0
          %432 = vmatprep.subr.bf16.mxu0 0
          %433 = vmatpush1.bf16.msra.mxu0 %v430
          %434 = vmatprep.subr.bf16.mxu0 0
          %435 = vmatpush1.bf16.msra.mxu0 0
          %436 = vmatprep.subr.bf16.mxu0 0
          %437 = vmatpush1.bf16.msra.mxu0 0
          %438 = vmatprep.subr.bf16.mxu0 0
          %439 = vmatpush1.bf16.msra.mxu0 0
          %440 = vmatprep.subr.bf16.mxu0 0
          %441 = vmatpush1.bf16.msra.mxu0 0
          %442 = vmatprep.subr.bf16.mxu0 0
          %443 = vmatpush1.bf16.msra.mxu0 0
          %444 = vmatprep.subr.bf16.mxu0 0
          %445 = vmatpush1.bf16.msra.mxu0 0
          %446 = vmatprep.subr.bf16.mxu0 0
          %447 = vmatpush1.bf16.msra.mxu0 0
          %448 = vmatprep.subr.bf16.mxu0 0
          %449 = vmatpush1.bf16.msra.mxu0 0
          %450 = vmatprep.subr.bf16.mxu0 0
          %451 = vmatpush1.bf16.msra.mxu0 0
          %452 = vmatprep.subr.bf16.mxu0 0
          %453 = vmatpush1.bf16.msra.mxu0 0
          %454 = vmatprep.subr.bf16.mxu0 0
          %455 = vmatpush1.bf16.msra.mxu0 0
          %456 = vmatprep.subr.bf16.mxu0 0
          %457 = vmatpush1.bf16.msra.mxu0 0
          %458 = vmatprep.subr.bf16.mxu0 0
          %459 = vmatpush1.bf16.msra.mxu0 0
          %460 = vmatprep.subr.bf16.mxu0 0
          %461 = vmatpush1.bf16.msra.mxu0 0
          %462 = vmatprep.subr.bf16.mxu0 0
          %463 = vmatpush1.bf16.msra.mxu0 0
          %464 = vmatprep.mubr.bf16.mxu0 0
          %465 = vmatmul.mubr.bf16.gmra.mrb[0].mxu0 %v417
          %v466 = vpop.f32.mrb[0].mxu0
          %v467 = vadd.f32 0.0, %v466
          %v468 = vpop.f32.mrb[0].mxu0
          %v469 = vpop.f32.mrb[0].mxu0
          %v470 = vadd.f32 0.0, %v469
          %v471 = vpop.f32.mrb[0].mxu0
          %472 = vmatprep.mubr.bf16.mxu0 0
          %473 = vmatmul.mubr.bf16.gmra.mrb[0].mxu0 %v420
          %v474 = vpop.f32.mrb[0].mxu0
          %v475 = vadd.f32 0.0, %v474
          %v476 = vpop.f32.mrb[0].mxu0
          %v477 = vpop.f32.mrb[0].mxu0
          %v478 = vadd.f32 0.0, %v477
          %v479 = vpop.f32.mrb[0].mxu0
          %480 = vmatprep.mubr.bf16.mxu0 0
          %481 = vmatmul.mubr.bf16.gmra.mrb[0].mxu0 %v423
          %v482 = vpop.f32.mrb[0].mxu0
          %v483 = vadd.f32 0.0, %v482
          %v484 = vpop.f32.mrb[0].mxu0
          %v485 = vpop.f32.mrb[0].mxu0
          %v486 = vadd.f32 0.0, %v485
          %v487 = vpop.f32.mrb[0].mxu0
          %488 = vmatprep.mubr.bf16.mxu0 0
          %489 = vmatmul.mubr.bf16.gmra.mrb[0].mxu0 %v426
          %v490 = vpop.f32.mrb[0].mxu0
          %v491 = vadd.f32 0.0, %v490
          %v492 = vpop.f32.mrb[0].mxu0
          %v493 = vpop.f32.mrb[0].mxu0
          %v494 = vadd.f32 0.0, %v493
          %v495 = vpop.f32.mrb[0].mxu0
          %496 = vdwg.mxu0
          %vm497 = vcmask 162816
          %498 = vst.msk [vmem:[#allocation3] sm:$0xff] %vm497, %v467
          %499 = vst.msk [vmem:[#allocation3 + $0x8] sm:$0xff] %vm497, %v470
          %500 = vst.msk [vmem:[#allocation3 + $0x10] sm:$0xff] %vm497, %v475
          %501 = vst.msk [vmem:[#allocation3 + $0x18] sm:$0xff] %vm497, %v478
          %502 = vst.msk [vmem:[#allocation3 + $0x20] sm:$0xff] %vm497, %v483
          %503 = vst.msk [vmem:[#allocation3 + $0x28] sm:$0xff] %vm497, %v486
          %504 = vst.msk [vmem:[#allocation3 + $0x30] sm:$0xff] %vm497, %v491
          %505 = vst.msk [vmem:[#allocation3 + $0x38] sm:$0xff] %vm497, %v494
          %514 = vrot.lane.b32.xlu0 %v467, 110
          %v515 = vpop.permute.xlu0 %514
          %516 = vrot.lane.b32.xlu0 %v470, 110
          %v517 = vpop.permute.xlu0 %516
          %518 = vrot.lane.b32.xlu0 %v475, 110
          %v519 = vpop.permute.xlu0 %518
          %520 = vrot.lane.b32.xlu0 %v478, 110
          %v521 = vpop.permute.xlu0 %520
          %522 = vrot.lane.b32.xlu0 %v483, 110
          %v523 = vpop.permute.xlu0 %522
          %524 = vrot.lane.b32.xlu0 %v486, 110
          %v525 = vpop.permute.xlu0 %524
          %526 = vrot.lane.b32.xlu0 %v491, 110
          %v527 = vpop.permute.xlu0 %526
          %528 = vrot.lane.b32.xlu0 %v494, 110
          %v529 = vpop.permute.xlu0 %528
          %538 = vxpose.xlu0.b32.start [1/16] %v515, 128
          %539 = vxpose.xlu0.b32.cont [2/16] %v517, 128
          %540 = vxpose.xlu0.b32.cont [3/16] %v519, 128
          %541 = vxpose.xlu0.b32.cont [4/16] %v521, 128
          %542 = vxpose.xlu0.b32.cont [5/16] %v523, 128
          %543 = vxpose.xlu0.b32.cont [6/16] %v525, 128
          %544 = vxpose.xlu0.b32.cont [7/16] %v527, 128
          %545 = vxpose.xlu0.b32.cont [8/16] %v529, 128
          %546 = vxpose.xlu0.b32.cont [9/16] 0.0, 128
          %547 = vxpose.xlu0.b32.cont [10/16] 0.0, 128
          %548 = vxpose.xlu0.b32.cont [11/16] 0.0, 128
          %549 = vxpose.xlu0.b32.cont [12/16] 0.0, 128
          %550 = vxpose.xlu0.b32.cont [13/16] 0.0, 128
          %551 = vxpose.xlu0.b32.cont [14/16] 0.0, 128
          %552 = vxpose.xlu0.b32.cont [15/16] 0.0, 128
          %553 = vxpose.xlu0.b32.end [16/16] 0.0, 128
          %v554 = vpop.trf.xlu0
          %v555 = vpop.trf.xlu0
          %v556 = vpop.trf.xlu0
          %v557 = vpop.trf.xlu0
          %v558 = vpop.trf.xlu0
          %v559 = vpop.trf.xlu0
          %v560 = vpop.trf.xlu0
          %v561 = vpop.trf.xlu0
          %v562 = vpop.trf.xlu0
          %v563 = vpop.trf.xlu0
          %v564 = vpop.trf.xlu0
          %v565 = vpop.trf.xlu0
          %v566 = vpop.trf.xlu0
          %v567 = vpop.trf.xlu0
          %v568 = vpop.trf.xlu0
          %v569 = vpop.trf.xlu0
          %vm570 = vcmask 517120
          %571 = vst.msk [vmem:[#allocation4] sm:$0x3] %vm570, %v554
        $region72: #{tpu_custom_call.1} parent=67 // pred_fallthru
          _
        %v572 = vld [vmem:[#allocation3] sm:$0xff]
        %v573 = vld [vmem:[#allocation3 + $0x8] sm:$0xff]
        %v574 = vld [vmem:[#allocation3 + $0x10] sm:$0xff]
        %v575 = vld [vmem:[#allocation3 + $0x18] sm:$0xff]
        %v576 = vld [vmem:[#allocation3 + $0x20] sm:$0xff]
        %v577 = vld [vmem:[#allocation3 + $0x28] sm:$0xff]
        %v578 = vld [vmem:[#allocation3 + $0x30] sm:$0xff]
        %v579 = vld [vmem:[#allocation3 + $0x38] sm:$0xff]
        %s580 = scalar_lea.vmem [#allocation3], %s389
        %v581 = vld [vmem:[%s580] sm:$0xff]
        %v582 = vld [vmem:[%s580 + $0x8] sm:$0xff]
        %v583 = vld [vmem:[#allocation4] sm:$0x1]
        %585 = vset.pattern.permute.xlu0 16
        %586 = vperm.xlu0 %585, %v581
        %v587 = vpop.permute.xlu0 %586
        %590 = vset.pattern.permute.xlu0 16
        %591 = vperm.xlu0 %590, %v582
        %v592 = vpop.permute.xlu0 %591
        %v594 = vlaneseq
        %v595 = vshrl.u32 %v594, 7
        %v596 = vsub.s32 0, %v595
        %v597 = vrot.slane %v583, %v596
        %v598 = vadd.f32 %v587, %v597
        %v599 = vadd.f32 %v592, %v597
        %v600 = vmul.f32 %v598, 0.2
        %v601 = vmul.f32 %v599, 0.2
        %v602 = vmax.f32 %v598, %v600
        %v603 = vmax.f32 %v599, %v601
        %v604 = vadd.f32 %v602, %v392
        %v605 = vadd.f32 %v603, %v393
        %vm606 = vcmask 523264
        %v607 = vsel %vm606, %v604, -inf
        %608 = vmax.xlane.f32.xlu0 %v607
        %v609 = vpop.xlane.xlu0 %608
        %v610 = vsel %vm606, %v605, -inf
        %611 = vmax.xlane.f32.xlu0 %v610
        %v612 = vpop.xlane.xlu0 %611
        %v613 = vsub.f32 %v604, %v609
        %v614 = vsub.f32 %v605, %v612
        %v615 = vmul.f32 %v613, 1.442695
        %v616 = vpow.pop %v615
        %v617 = vmul.f32 %v614, 1.442695
        %v618 = vpow.pop %v617
        %vm619 = vcmask 64512
        %v620 = vsel %vm619, %v572, 1.0
        %v621 = vsel %vm619, %v573, 1.0
        %v622 = vsel %vm619, %v574, 1.0
        %v623 = vsel %vm619, %v575, 1.0
        %v624 = vsel %vm619, %v576, 1.0
        %v625 = vsel %vm619, %v577, 1.0
        %v626 = vsel %vm619, %v578, 1.0
        %v627 = vsel %vm619, %v579, 1.0
        %v628 = vpack.c.bf16 %v618, %v616
        %v629 = vpack.c.bf16 %v621, %v620
        %v630 = vpack.c.bf16 %v623, %v622
        %v631 = vpack.c.bf16 %v625, %v624
        %v632 = vpack.c.bf16 %v627, %v626
        %v634 = vsel %vm606, %v628, 0
        %636 = vmatprep.subr.bf16.mxu0 0
        %637 = vmatpush1.bf16.msra.mxu0 %v629
        %638 = vmatprep.subr.bf16.mxu0 0
        %639 = vmatpush1.bf16.msra.mxu0 %v630
        %640 = vmatprep.subr.bf16.mxu0 0
        %641 = vmatpush1.bf16.msra.mxu0 %v631
        %642 = vmatprep.subr.bf16.mxu0 0
        %643 = vmatpush1.bf16.msra.mxu0 %v632
        %644 = vmatprep.subr.bf16.mxu0 0
        %645 = vmatpush1.bf16.msra.mxu0 0
        %646 = vmatprep.subr.bf16.mxu0 0
        %647 = vmatpush1.bf16.msra.mxu0 0
        %648 = vmatprep.subr.bf16.mxu0 0
        %649 = vmatpush1.bf16.msra.mxu0 0
        %650 = vmatprep.subr.bf16.mxu0 0
        %651 = vmatpush1.bf16.msra.mxu0 0
        %652 = vmatprep.subr.bf16.mxu0 0
        %653 = vmatpush1.bf16.msra.mxu0 0
        %654 = vmatprep.subr.bf16.mxu0 0
        %655 = vmatpush1.bf16.msra.mxu0 0
        %656 = vmatprep.subr.bf16.mxu0 0
        %657 = vmatpush1.bf16.msra.mxu0 0
        %658 = vmatprep.subr.bf16.mxu0 0
        %659 = vmatpush1.bf16.msra.mxu0 0
        %660 = vmatprep.subr.bf16.mxu0 0
        %661 = vmatpush1.bf16.msra.mxu0 0
        %662 = vmatprep.subr.bf16.mxu0 0
        %663 = vmatpush1.bf16.msra.mxu0 0
        %664 = vmatprep.subr.bf16.mxu0 0
        %665 = vmatpush1.bf16.msra.mxu0 0
        %666 = vmatprep.subr.bf16.mxu0 0
        %667 = vmatpush1.bf16.msra.mxu0 0
        %668 = vmatprep.mubr.bf16.mxu0 0
        %669 = vmatmul.mubr.bf16.gmra.mrb[0].mxu0 %v634
        %v670 = vpop.f32.mrb[0].mxu0
        %v671 = vadd.f32 0.0, %v670
        %v672 = vpop.f32.mrb[0].mxu0
        %v673 = vpop.f32.mrb[0].mxu0
        %v674 = vadd.f32 0.0, %v673
        %v675 = vpop.f32.mrb[0].mxu0
        %676 = vdwg.mxu0
        %v677 = vrcp.pop %v671
        %v678 = vrcp.pop %v674
        %680 = vset.pattern.permute.xlu0 8
        %681 = vperm.xlu0 %680, %v677
        %v682 = vpop.permute.xlu0 %681
        %685 = vset.pattern.permute.xlu0 8
        %686 = vperm.xlu0 %685, %v678
        %v687 = vpop.permute.xlu0 %686
        %v689 = vmul.f32 %v671, %v682
        %v690 = vmul.f32 %v674, %v687
        %v691 = vld [vmem:[%s4] sm:$0x1]
        %v693 = vlaneseq
        %v694 = vshrl.u32 %v693, 7
        %v695 = vsub.s32 0, %v694
        %v696 = vrot.slane %v691, %v695
        %v698 = vadd.f32 %v689, %v696
        %v699 = vadd.f32 %v690, %v696
        %v700 = vmax.f32 %v698, 0.0
        %v701 = vmax.f32 %v699, 0.0
        %s702 = scalar_lea.vmem [#allocation2], %s389
        %703 = vst.msk [vmem:[%s702] sm:$0xff] %vm619, %v700
        %704 = vst.msk [vmem:[%s702 + $0x8] sm:$0xff] %vm619, %v701
        %v705 = vld [vmem:[#allocation4 + $0x1] sm:$0x1]
        %706 = vset.pattern.permute.xlu0 17
        %707 = vperm.xlu0 %706, %v581
        %v708 = vpop.permute.xlu0 %707
        %710 = vset.pattern.permute.xlu0 17
        %711 = vperm.xlu0 %710, %v582
        %v712 = vpop.permute.xlu0 %711
        %v714 = vlaneseq
        %v715 = vshrl.u32 %v714, 7
        %v716 = vsub.s32 0, %v715
        %v717 = vrot.slane %v705, %v716
        %v718 = vadd.f32 %v708, %v717
        %v719 = vadd.f32 %v712, %v717
        %v720 = vmul.f32 %v718, 0.2
        %v721 = vmul.f32 %v719, 0.2
        %v722 = vmax.f32 %v718, %v720
        %v723 = vmax.f32 %v719, %v721
        %v724 = vadd.f32 %v722, %v392
        %v725 = vadd.f32 %v723, %v393
        %v726 = vsel %vm606, %v724, -inf
        %727 = vmax.xlane.f32.xlu0 %v726
        %v728 = vpop.xlane.xlu0 %727
        %v729 = vsel %vm606, %v725, -inf
        %730 = vmax.xlane.f32.xlu0 %v729
        %v731 = vpop.xlane.xlu0 %730
        %v732 = vsub.f32 %v724, %v728
        %v733 = vsub.f32 %v725, %v731
        %v734 = vmul.f32 %v732, 1.442695
        %v735 = vpow.pop %v734
        %v736 = vmul.f32 %v733, 1.442695
        %v737 = vpow.pop %v736
        %746 = vrot.lane.b32.xlu0 %v572, 120
        %v747 = vpop.permute.xlu0 %746
        %748 = vrot.lane.b32.xlu0 %v573, 120
        %v749 = vpop.permute.xlu0 %748
        %750 = vrot.lane.b32.xlu0 %v574, 120
        %v751 = vpop.permute.xlu0 %750
        %752 = vrot.lane.b32.xlu0 %v575, 120
        %v753 = vpop.permute.xlu0 %752
        %754 = vrot.lane.b32.xlu0 %v576, 120
        %v755 = vpop.permute.xlu0 %754
        %756 = vrot.lane.b32.xlu0 %v577, 120
        %v757 = vpop.permute.xlu0 %756
        %758 = vrot.lane.b32.xlu0 %v578, 120
        %v759 = vpop.permute.xlu0 %758
        %760 = vrot.lane.b32.xlu0 %v579, 120
        %v761 = vpop.permute.xlu0 %760
        %v770 = vsel %vm619, %v747, 1.0
        %v771 = vsel %vm619, %v749, 1.0
        %v772 = vsel %vm619, %v751, 1.0
        %v773 = vsel %vm619, %v753, 1.0
        %v774 = vsel %vm619, %v755, 1.0
        %v775 = vsel %vm619, %v757, 1.0
        %v776 = vsel %vm619, %v759, 1.0
        %v777 = vsel %vm619, %v761, 1.0
        %v778 = vpack.c.bf16 %v737, %v735
        %v779 = vpack.c.bf16 %v771, %v770
        %v780 = vpack.c.bf16 %v773, %v772
        %v781 = vpack.c.bf16 %v775, %v774
        %v782 = vpack.c.bf16 %v777, %v776
        %v784 = vsel %vm606, %v778, 0
        %786 = vmatprep.subr.bf16.mxu0 0
        %787 = vmatpush1.bf16.msra.mxu0 %v779
        %788 = vmatprep.subr.bf16.mxu0 0
        %789 = vmatpush1.bf16.msra.mxu0 %v780
        %790 = vmatprep.subr.bf16.mxu0 0
        %791 = vmatpush1.bf16.msra.mxu0 %v781
        %792 = vmatprep.subr.bf16.mxu0 0
        %793 = vmatpush1.bf16.msra.mxu0 %v782
        %794 = vmatprep.subr.bf16.mxu0 0
        %795 = vmatpush1.bf16.msra.mxu0 0
        %796 = vmatprep.subr.bf16.mxu0 0
        %797 = vmatpush1.bf16.msra.mxu0 0
        %798 = vmatprep.subr.bf16.mxu0 0
        %799 = vmatpush1.bf16.msra.mxu0 0
        %800 = vmatprep.subr.bf16.mxu0 0
        %801 = vmatpush1.bf16.msra.mxu0 0
        %802 = vmatprep.subr.bf16.mxu0 0
        %803 = vmatpush1.bf16.msra.mxu0 0
        %804 = vmatprep.subr.bf16.mxu0 0
        %805 = vmatpush1.bf16.msra.mxu0 0
        %806 = vmatprep.subr.bf16.mxu0 0
        %807 = vmatpush1.bf16.msra.mxu0 0
        %808 = vmatprep.subr.bf16.mxu0 0
        %809 = vmatpush1.bf16.msra.mxu0 0
        %810 = vmatprep.subr.bf16.mxu0 0
        %811 = vmatpush1.bf16.msra.mxu0 0
        %812 = vmatprep.subr.bf16.mxu0 0
        %813 = vmatpush1.bf16.msra.mxu0 0
        %814 = vmatprep.subr.bf16.mxu0 0
        %815 = vmatpush1.bf16.msra.mxu0 0
        %816 = vmatprep.subr.bf16.mxu0 0
        %817 = vmatpush1.bf16.msra.mxu0 0
        %818 = vmatprep.mubr.bf16.mxu0 0
        %819 = vmatmul.mubr.bf16.gmra.mrb[0].mxu0 %v784
        %v820 = vpop.f32.mrb[0].mxu0
        %v821 = vadd.f32 0.0, %v820
        %v822 = vpop.f32.mrb[0].mxu0
        %v823 = vpop.f32.mrb[0].mxu0
        %v824 = vadd.f32 0.0, %v823
        %v825 = vpop.f32.mrb[0].mxu0
        %826 = vdwg.mxu0
        %v827 = vrcp.pop %v821
        %v828 = vrcp.pop %v824
        %830 = vset.pattern.permute.xlu0 8
        %831 = vperm.xlu0 %830, %v827
        %v832 = vpop.permute.xlu0 %831
        %835 = vset.pattern.permute.xlu0 8
        %836 = vperm.xlu0 %835, %v828
        %v837 = vpop.permute.xlu0 %836
        %v839 = vmul.f32 %v821, %v832
        %v840 = vmul.f32 %v824, %v837
        %v841 = vld [vmem:[%s4] sm:$0x1]
        %v843 = vlaneseq
        %v844 = vshrl.u32 %v843, 7
        %v845 = vsub.s32 0, %v844
        %v846 = vrot.slane %v841, %v845
        %847 = vrot.lane.b32.xlu0 %v846, 120
        %v848 = vpop.permute.xlu0 %847
        %v850 = vadd.f32 %v839, %v848
        %v851 = vadd.f32 %v840, %v848
        %v852 = vmax.f32 %v850, 0.0
        %v853 = vmax.f32 %v851, 0.0
        %856 = vrot.lane.b32.xlu0 %v852, 8
        %v857 = vpop.permute.xlu0 %856
        %858 = vrot.lane.b32.xlu0 %v853, 8
        %v859 = vpop.permute.xlu0 %858
        %vm862 = vcmask 130112
        %863 = vst.msk [vmem:[%s702] sm:$0xff] %vm862, %v857
        %864 = vst.msk [vmem:[%s702 + $0x8] sm:$0xff] %vm862, %v859
      $region68: #{tpu_custom_call.1} parent=63 // pred_fallthru
        _
      %p865 = scmp.eq.s32.totalorder %s28, 1
      // Predicated region
      $region73: #{tpu_custom_call.1} parent=63 // pred_check
        %p866 = pneg %p865
      $region74: #{tpu_custom_call.1} parent=63 // pred_check_branch
        %868 = sbr.rel (%p866) target = $region76
      $region75: #{tpu_custom_call.1} parent=63 // pred_region
        %p869 = scmp.eq.s32.totalorder %s29, 0
        // Predicated region
        $region77: #{tpu_custom_call.1} parent=75 // pred_check
          %p870 = pneg %p869
        $region78: #{tpu_custom_call.1} parent=75 // pred_check_branch
          %872 = sbr.rel (%p870) target = $region80
        $region79: #{tpu_custom_call.1} parent=75 // pred_region
          %v873 = vld [vmem:[#allocation2] sm:$0xff]
          %v874 = vld [vmem:[#allocation2 + $0x8] sm:$0xff]
          %v875 = vld [vmem:[#allocation2 + $0x10] sm:$0xff]
          %v876 = vld [vmem:[#allocation2 + $0x18] sm:$0xff]
          %v877 = vld [vmem:[#allocation2 + $0x20] sm:$0xff]
          %v878 = vld [vmem:[#allocation2 + $0x28] sm:$0xff]
          %v879 = vld [vmem:[#allocation2 + $0x30] sm:$0xff]
          %v880 = vld [vmem:[#allocation2 + $0x38] sm:$0xff]
          %v881 = vpack.c.bf16 %v874, %v873
          %v882 = vpack.c.bf16 %v876, %v875
          %v883 = vpack.c.bf16 %v878, %v877
          %v884 = vpack.c.bf16 %v880, %v879
          %v885 = vld [vmem:[%s5] sm:$0xf]
          %v886 = vld [vmem:[%s5 + $0x4] sm:$0xf]
          %v889 = vunpack.c.l.b16 %v885
          %v890 = vunpack.c.l.b16 %v886
          %v891 = vpack.c.b16 %v890, %v889
          %vm893 = vcmask 130048
          %v895 = vsel %vm893, %v881, 0
          %v898 = vsel %vm893, %v882, 0
          %v901 = vsel %vm893, %v883, 0
          %v904 = vsel %vm893, %v884, 0
          %906 = vmatprep.subr.bf16.mxu0 0
          %907 = vmatpush1.bf16.msra.mxu0 %v891
          %908 = vmatprep.subr.bf16.mxu0 0
          %909 = vmatpush1.bf16.msra.mxu0 0
          %910 = vmatprep.subr.bf16.mxu0 0
          %911 = vmatpush1.bf16.msra.mxu0 0
          %912 = vmatprep.subr.bf16.mxu0 0
          %913 = vmatpush1.bf16.msra.mxu0 0
          %914 = vmatprep.subr.bf16.mxu0 0
          %915 = vmatpush1.bf16.msra.mxu0 0
          %916 = vmatprep.subr.bf16.mxu0 0
          %917 = vmatpush1.bf16.msra.mxu0 0
          %918 = vmatprep.subr.bf16.mxu0 0
          %919 = vmatpush1.bf16.msra.mxu0 0
          %920 = vmatprep.subr.bf16.mxu0 0
          %921 = vmatpush1.bf16.msra.mxu0 0
          %922 = vmatprep.subr.bf16.mxu0 0
          %923 = vmatpush1.bf16.msra.mxu0 0
          %924 = vmatprep.subr.bf16.mxu0 0
          %925 = vmatpush1.bf16.msra.mxu0 0
          %926 = vmatprep.subr.bf16.mxu0 0
          %927 = vmatpush1.bf16.msra.mxu0 0
          %928 = vmatprep.subr.bf16.mxu0 0
          %929 = vmatpush1.bf16.msra.mxu0 0
          %930 = vmatprep.subr.bf16.mxu0 0
          %931 = vmatpush1.bf16.msra.mxu0 0
          %932 = vmatprep.subr.bf16.mxu0 0
          %933 = vmatpush1.bf16.msra.mxu0 0
          %934 = vmatprep.subr.bf16.mxu0 0
          %935 = vmatpush1.bf16.msra.mxu0 0
          %936 = vmatprep.subr.bf16.mxu0 0
          %937 = vmatpush1.bf16.msra.mxu0 0
          %938 = vmatprep.mubr.bf16.mxu0 0
          %939 = vmatmul.mubr.bf16.gmra.mrb[0].mxu0 %v895
          %v940 = vpop.f32.mrb[0].mxu0
          %v941 = vadd.f32 0.0, %v940
          %v942 = vpop.f32.mrb[0].mxu0
          %v943 = vpop.f32.mrb[0].mxu0
          %v944 = vadd.f32 0.0, %v943
          %v945 = vpop.f32.mrb[0].mxu0
          %946 = vmatprep.mubr.bf16.mxu0 0
          %947 = vmatmul.mubr.bf16.gmra.mrb[0].mxu0 %v898
          %v948 = vpop.f32.mrb[0].mxu0
          %v949 = vadd.f32 0.0, %v948
          %v950 = vpop.f32.mrb[0].mxu0
          %v951 = vpop.f32.mrb[0].mxu0
          %v952 = vadd.f32 0.0, %v951
          %v953 = vpop.f32.mrb[0].mxu0
          %954 = vmatprep.mubr.bf16.mxu0 0
          %955 = vmatmul.mubr.bf16.gmra.mrb[0].mxu0 %v901
          %v956 = vpop.f32.mrb[0].mxu0
          %v957 = vadd.f32 0.0, %v956
          %v958 = vpop.f32.mrb[0].mxu0
          %v959 = vpop.f32.mrb[0].mxu0
          %v960 = vadd.f32 0.0, %v959
          %v961 = vpop.f32.mrb[0].mxu0
          %962 = vmatprep.mubr.bf16.mxu0 0
          %963 = vmatmul.mubr.bf16.gmra.mrb[0].mxu0 %v904
          %v964 = vpop.f32.mrb[0].mxu0
          %v965 = vadd.f32 0.0, %v964
          %v966 = vpop.f32.mrb[0].mxu0
          %v967 = vpop.f32.mrb[0].mxu0
          %v968 = vadd.f32 0.0, %v967
          %v969 = vpop.f32.mrb[0].mxu0
          %970 = vdwg.mxu0
          %vm971 = vcmask 162816
          %972 = vst.msk [vmem:[#allocation3] sm:$0xff] %vm971, %v941
          %973 = vst.msk [vmem:[#allocation3 + $0x8] sm:$0xff] %vm971, %v944
          %974 = vst.msk [vmem:[#allocation3 + $0x10] sm:$0xff] %vm971, %v949
          %975 = vst.msk [vmem:[#allocation3 + $0x18] sm:$0xff] %vm971, %v952
          %976 = vst.msk [vmem:[#allocation3 + $0x20] sm:$0xff] %vm971, %v957
          %977 = vst.msk [vmem:[#allocation3 + $0x28] sm:$0xff] %vm971, %v960
          %978 = vst.msk [vmem:[#allocation3 + $0x30] sm:$0xff] %vm971, %v965
          %979 = vst.msk [vmem:[#allocation3 + $0x38] sm:$0xff] %vm971, %v968
          %988 = vrot.lane.b32.xlu0 %v941, 110
          %v989 = vpop.permute.xlu0 %988
          %990 = vrot.lane.b32.xlu0 %v944, 110
          %v991 = vpop.permute.xlu0 %990
          %992 = vrot.lane.b32.xlu0 %v949, 110
          %v993 = vpop.permute.xlu0 %992
          %994 = vrot.lane.b32.xlu0 %v952, 110
          %v995 = vpop.permute.xlu0 %994
          %996 = vrot.lane.b32.xlu0 %v957, 110
          %v997 = vpop.permute.xlu0 %996
          %998 = vrot.lane.b32.xlu0 %v960, 110
          %v999 = vpop.permute.xlu0 %998
          %1000 = vrot.lane.b32.xlu0 %v965, 110
          %v1001 = vpop.permute.xlu0 %1000
          %1002 = vrot.lane.b32.xlu0 %v968, 110
          %v1003 = vpop.permute.xlu0 %1002
          %1012 = vxpose.xlu0.b32.start [1/16] %v989, 128
          %1013 = vxpose.xlu0.b32.cont [2/16] %v991, 128
          %1014 = vxpose.xlu0.b32.cont [3/16] %v993, 128
          %1015 = vxpose.xlu0.b32.cont [4/16] %v995, 128
          %1016 = vxpose.xlu0.b32.cont [5/16] %v997, 128
          %1017 = vxpose.xlu0.b32.cont [6/16] %v999, 128
          %1018 = vxpose.xlu0.b32.cont [7/16] %v1001, 128
          %1019 = vxpose.xlu0.b32.cont [8/16] %v1003, 128
          %1020 = vxpose.xlu0.b32.cont [9/16] 0.0, 128
          %1021 = vxpose.xlu0.b32.cont [10/16] 0.0, 128
          %1022 = vxpose.xlu0.b32.cont [11/16] 0.0, 128
          %1023 = vxpose.xlu0.b32.cont [12/16] 0.0, 128
          %1024 = vxpose.xlu0.b32.cont [13/16] 0.0, 128
          %1025 = vxpose.xlu0.b32.cont [14/16] 0.0, 128
          %1026 = vxpose.xlu0.b32.cont [15/16] 0.0, 128
          %1027 = vxpose.xlu0.b32.end [16/16] 0.0, 128
          %v1028 = vpop.trf.xlu0
          %v1029 = vpop.trf.xlu0
          %v1030 = vpop.trf.xlu0
          %v1031 = vpop.trf.xlu0
          %v1032 = vpop.trf.xlu0
          %v1033 = vpop.trf.xlu0
          %v1034 = vpop.trf.xlu0
          %v1035 = vpop.trf.xlu0
          %v1036 = vpop.trf.xlu0
          %v1037 = vpop.trf.xlu0
          %v1038 = vpop.trf.xlu0
          %v1039 = vpop.trf.xlu0
          %v1040 = vpop.trf.xlu0
          %v1041 = vpop.trf.xlu0
          %v1042 = vpop.trf.xlu0
          %v1043 = vpop.trf.xlu0
          %vm1044 = vcmask 517120
          %1045 = vst.msk [vmem:[#allocation4] sm:$0x3] %vm1044, %v1028
        $region80: #{tpu_custom_call.1} parent=75 // pred_fallthru
          _
        %v1046 = vld [vmem:[#allocation3] sm:$0xff]
        %v1047 = vld [vmem:[#allocation3 + $0x8] sm:$0xff]
        %v1048 = vld [vmem:[#allocation3 + $0x10] sm:$0xff]
        %v1049 = vld [vmem:[#allocation3 + $0x18] sm:$0xff]
        %v1050 = vld [vmem:[#allocation3 + $0x20] sm:$0xff]
        %v1051 = vld [vmem:[#allocation3 + $0x28] sm:$0xff]
        %v1052 = vld [vmem:[#allocation3 + $0x30] sm:$0xff]
        %v1053 = vld [vmem:[#allocation3 + $0x38] sm:$0xff]
        %s1054 = scalar_lea.vmem [#allocation3], %s389
        %v1055 = vld [vmem:[%s1054] sm:$0xff]
        %v1056 = vld [vmem:[%s1054 + $0x8] sm:$0xff]
        %v1057 = vld [vmem:[#allocation4] sm:$0x1]
        %1059 = vset.pattern.permute.xlu0 16
        %1060 = vperm.xlu0 %1059, %v1055
        %v1061 = vpop.permute.xlu0 %1060
        %1064 = vset.pattern.permute.xlu0 16
        %1065 = vperm.xlu0 %1064, %v1056
        %v1066 = vpop.permute.xlu0 %1065
        %v1068 = vlaneseq
        %v1069 = vshrl.u32 %v1068, 7
        %v1070 = vsub.s32 0, %v1069
        %v1071 = vrot.slane %v1057, %v1070
        %v1072 = vadd.f32 %v1061, %v1071
        %v1073 = vadd.f32 %v1066, %v1071
        %v1074 = vmul.f32 %v1072, 0.2
        %v1075 = vmul.f32 %v1073, 0.2
        %v1076 = vmax.f32 %v1072, %v1074
        %v1077 = vmax.f32 %v1073, %v1075
        %v1078 = vadd.f32 %v1076, %v392
        %v1079 = vadd.f32 %v1077, %v393
        %vm1080 = vcmask 523264
        %v1081 = vsel %vm1080, %v1078, -inf
        %1082 = vmax.xlane.f32.xlu0 %v1081
        %v1083 = vpop.xlane.xlu0 %1082
        %v1084 = vsel %vm1080, %v1079, -inf
        %1085 = vmax.xlane.f32.xlu0 %v1084
        %v1086 = vpop.xlane.xlu0 %1085
        %v1087 = vsub.f32 %v1078, %v1083
        %v1088 = vsub.f32 %v1079, %v1086
        %v1089 = vmul.f32 %v1087, 1.442695
        %v1090 = vpow.pop %v1089
        %v1091 = vmul.f32 %v1088, 1.442695
        %v1092 = vpow.pop %v1091
        %vm1093 = vcmask 64512
        %v1094 = vsel %vm1093, %v1046, 1.0
        %v1095 = vsel %vm1093, %v1047, 1.0
        %v1096 = vsel %vm1093, %v1048, 1.0
        %v1097 = vsel %vm1093, %v1049, 1.0
        %v1098 = vsel %vm1093, %v1050, 1.0
        %v1099 = vsel %vm1093, %v1051, 1.0
        %v1100 = vsel %vm1093, %v1052, 1.0
        %v1101 = vsel %vm1093, %v1053, 1.0
        %v1102 = vpack.c.bf16 %v1092, %v1090
        %v1103 = vpack.c.bf16 %v1095, %v1094
        %v1104 = vpack.c.bf16 %v1097, %v1096
        %v1105 = vpack.c.bf16 %v1099, %v1098
        %v1106 = vpack.c.bf16 %v1101, %v1100
        %v1108 = vsel %vm1080, %v1102, 0
        %1110 = vmatprep.subr.bf16.mxu0 0
        %1111 = vmatpush1.bf16.msra.mxu0 %v1103
        %1112 = vmatprep.subr.bf16.mxu0 0
        %1113 = vmatpush1.bf16.msra.mxu0 %v1104
        %1114 = vmatprep.subr.bf16.mxu0 0
        %1115 = vmatpush1.bf16.msra.mxu0 %v1105
        %1116 = vmatprep.subr.bf16.mxu0 0
        %1117 = vmatpush1.bf16.msra.mxu0 %v1106
        %1118 = vmatprep.subr.bf16.mxu0 0
        %1119 = vmatpush1.bf16.msra.mxu0 0
        %1120 = vmatprep.subr.bf16.mxu0 0
        %1121 = vmatpush1.bf16.msra.mxu0 0
        %1122 = vmatprep.subr.bf16.mxu0 0
        %1123 = vmatpush1.bf16.msra.mxu0 0
        %1124 = vmatprep.subr.bf16.mxu0 0
        %1125 = vmatpush1.bf16.msra.mxu0 0
        %1126 = vmatprep.subr.bf16.mxu0 0
        %1127 = vmatpush1.bf16.msra.mxu0 0
        %1128 = vmatprep.subr.bf16.mxu0 0
        %1129 = vmatpush1.bf16.msra.mxu0 0
        %1130 = vmatprep.subr.bf16.mxu0 0
        %1131 = vmatpush1.bf16.msra.mxu0 0
        %1132 = vmatprep.subr.bf16.mxu0 0
        %1133 = vmatpush1.bf16.msra.mxu0 0
        %1134 = vmatprep.subr.bf16.mxu0 0
        %1135 = vmatpush1.bf16.msra.mxu0 0
        %1136 = vmatprep.subr.bf16.mxu0 0
        %1137 = vmatpush1.bf16.msra.mxu0 0
        %1138 = vmatprep.subr.bf16.mxu0 0
        %1139 = vmatpush1.bf16.msra.mxu0 0
        %1140 = vmatprep.subr.bf16.mxu0 0
        %1141 = vmatpush1.bf16.msra.mxu0 0
        %1142 = vmatprep.mubr.bf16.mxu0 0
        %1143 = vmatmul.mubr.bf16.gmra.mrb[0].mxu0 %v1108
        %v1144 = vpop.f32.mrb[0].mxu0
        %v1145 = vadd.f32 0.0, %v1144
        %v1146 = vpop.f32.mrb[0].mxu0
        %v1147 = vpop.f32.mrb[0].mxu0
        %v1148 = vadd.f32 0.0, %v1147
        %v1149 = vpop.f32.mrb[0].mxu0
        %1150 = vdwg.mxu0
        %v1151 = vrcp.pop %v1145
        %v1152 = vrcp.pop %v1148
        %1154 = vset.pattern.permute.xlu0 8
        %1155 = vperm.xlu0 %1154, %v1151
        %v1156 = vpop.permute.xlu0 %1155
        %1159 = vset.pattern.permute.xlu0 8
        %1160 = vperm.xlu0 %1159, %v1152
        %v1161 = vpop.permute.xlu0 %1160
        %v1163 = vmul.f32 %v1145, %v1156
        %v1164 = vmul.f32 %v1148, %v1161
        %v1165 = vld [vmem:[%s6] sm:$0x1]
        %v1167 = vlaneseq
        %v1168 = vshrl.u32 %v1167, 7
        %v1169 = vsub.s32 0, %v1168
        %v1170 = vrot.slane %v1165, %v1169
        %v1172 = vadd.f32 %v1163, %v1170
        %v1173 = vadd.f32 %v1164, %v1170
        %v1174 = vmax.f32 %v1172, 0.0
        %v1175 = vmax.f32 %v1173, 0.0
        %s1176 = sadd.s32 %s389, 64
        %s1177 = scalar_lea.vmem [#allocation2], %s1176
        %1178 = vst.msk [vmem:[%s1177] sm:$0xff] %vm1093, %v1174
        %1179 = vst.msk [vmem:[%s1177 + $0x8] sm:$0xff] %vm1093, %v1175
        %v1180 = vld [vmem:[#allocation4 + $0x1] sm:$0x1]
        %1181 = vset.pattern.permute.xlu0 17
        %1182 = vperm.xlu0 %1181, %v1055
        %v1183 = vpop.permute.xlu0 %1182
        %1185 = vset.pattern.permute.xlu0 17
        %1186 = vperm.xlu0 %1185, %v1056
        %v1187 = vpop.permute.xlu0 %1186
        %v1189 = vlaneseq
        %v1190 = vshrl.u32 %v1189, 7
        %v1191 = vsub.s32 0, %v1190
        %v1192 = vrot.slane %v1180, %v1191
        %v1193 = vadd.f32 %v1183, %v1192
        %v1194 = vadd.f32 %v1187, %v1192
        %v1195 = vmul.f32 %v1193, 0.2
        %v1196 = vmul.f32 %v1194, 0.2
        %v1197 = vmax.f32 %v1193, %v1195
        %v1198 = vmax.f32 %v1194, %v1196
        %v1199 = vadd.f32 %v1197, %v392
        %v1200 = vadd.f32 %v1198, %v393
        %v1201 = vsel %vm1080, %v1199, -inf
        %1202 = vmax.xlane.f32.xlu0 %v1201
        %v1203 = vpop.xlane.xlu0 %1202
        %v1204 = vsel %vm1080, %v1200, -inf
        %1205 = vmax.xlane.f32.xlu0 %v1204
        %v1206 = vpop.xlane.xlu0 %1205
        %v1207 = vsub.f32 %v1199, %v1203
        %v1208 = vsub.f32 %v1200, %v1206
        %v1209 = vmul.f32 %v1207, 1.442695
        %v1210 = vpow.pop %v1209
        %v1211 = vmul.f32 %v1208, 1.442695
        %v1212 = vpow.pop %v1211
        %1221 = vrot.lane.b32.xlu0 %v1046, 120
        %v1222 = vpop.permute.xlu0 %1221
        %1223 = vrot.lane.b32.xlu0 %v1047, 120
        %v1224 = vpop.permute.xlu0 %1223
        %1225 = vrot.lane.b32.xlu0 %v1048, 120
        %v1226 = vpop.permute.xlu0 %1225
        %1227 = vrot.lane.b32.xlu0 %v1049, 120
        %v1228 = vpop.permute.xlu0 %1227
        %1229 = vrot.lane.b32.xlu0 %v1050, 120
        %v1230 = vpop.permute.xlu0 %1229
        %1231 = vrot.lane.b32.xlu0 %v1051, 120
        %v1232 = vpop.permute.xlu0 %1231
        %1233 = vrot.lane.b32.xlu0 %v1052, 120
        %v1234 = vpop.permute.xlu0 %1233
        %1235 = vrot.lane.b32.xlu0 %v1053, 120
        %v1236 = vpop.permute.xlu0 %1235
        %v1245 = vsel %vm1093, %v1222, 1.0
        %v1246 = vsel %vm1093, %v1224, 1.0
        %v1247 = vsel %vm1093, %v1226, 1.0
        %v1248 = vsel %vm1093, %v1228, 1.0
        %v1249 = vsel %vm1093, %v1230, 1.0
        %v1250 = vsel %vm1093, %v1232, 1.0
        %v1251 = vsel %vm1093, %v1234, 1.0
        %v1252 = vsel %vm1093, %v1236, 1.0
        %v1253 = vpack.c.bf16 %v1212, %v1210
        %v1254 = vpack.c.bf16 %v1246, %v1245
        %v1255 = vpack.c.bf16 %v1248, %v1247
        %v1256 = vpack.c.bf16 %v1250, %v1249
        %v1257 = vpack.c.bf16 %v1252, %v1251
        %v1259 = vsel %vm1080, %v1253, 0
        %1261 = vmatprep.subr.bf16.mxu0 0
        %1262 = vmatpush1.bf16.msra.mxu0 %v1254
        %1263 = vmatprep.subr.bf16.mxu0 0
        %1264 = vmatpush1.bf16.msra.mxu0 %v1255
        %1265 = vmatprep.subr.bf16.mxu0 0
        %1266 = vmatpush1.bf16.msra.mxu0 %v1256
        %1267 = vmatprep.subr.bf16.mxu0 0
        %1268 = vmatpush1.bf16.msra.mxu0 %v1257
        %1269 = vmatprep.subr.bf16.mxu0 0
        %1270 = vmatpush1.bf16.msra.mxu0 0
        %1271 = vmatprep.subr.bf16.mxu0 0
        %1272 = vmatpush1.bf16.msra.mxu0 0
        %1273 = vmatprep.subr.bf16.mxu0 0
        %1274 = vmatpush1.bf16.msra.mxu0 0
        %1275 = vmatprep.subr.bf16.mxu0 0
        %1276 = vmatpush1.bf16.msra.mxu0 0
        %1277 = vmatprep.subr.bf16.mxu0 0
        %1278 = vmatpush1.bf16.msra.mxu0 0
        %1279 = vmatprep.subr.bf16.mxu0 0
        %1280 = vmatpush1.bf16.msra.mxu0 0
        %1281 = vmatprep.subr.bf16.mxu0 0
        %1282 = vmatpush1.bf16.msra.mxu0 0
        %1283 = vmatprep.subr.bf16.mxu0 0
        %1284 = vmatpush1.bf16.msra.mxu0 0
        %1285 = vmatprep.subr.bf16.mxu0 0
        %1286 = vmatpush1.bf16.msra.mxu0 0
        %1287 = vmatprep.subr.bf16.mxu0 0
        %1288 = vmatpush1.bf16.msra.mxu0 0
        %1289 = vmatprep.subr.bf16.mxu0 0
        %1290 = vmatpush1.bf16.msra.mxu0 0
        %1291 = vmatprep.subr.bf16.mxu0 0
        %1292 = vmatpush1.bf16.msra.mxu0 0
        %1293 = vmatprep.mubr.bf16.mxu0 0
        %1294 = vmatmul.mubr.bf16.gmra.mrb[0].mxu0 %v1259
        %v1295 = vpop.f32.mrb[0].mxu0
        %v1296 = vadd.f32 0.0, %v1295
        %v1297 = vpop.f32.mrb[0].mxu0
        %v1298 = vpop.f32.mrb[0].mxu0
        %v1299 = vadd.f32 0.0, %v1298
        %v1300 = vpop.f32.mrb[0].mxu0
        %1301 = vdwg.mxu0
        %v1302 = vrcp.pop %v1296
        %v1303 = vrcp.pop %v1299
        %1305 = vset.pattern.permute.xlu0 8
        %1306 = vperm.xlu0 %1305, %v1302
        %v1307 = vpop.permute.xlu0 %1306
        %1310 = vset.pattern.permute.xlu0 8
        %1311 = vperm.xlu0 %1310, %v1303
        %v1312 = vpop.permute.xlu0 %1311
        %v1314 = vmul.f32 %v1296, %v1307
        %v1315 = vmul.f32 %v1299, %v1312
        %v1316 = vld [vmem:[%s6] sm:$0x1]
        %v1318 = vlaneseq
        %v1319 = vshrl.u32 %v1318, 7
        %v1320 = vsub.s32 0, %v1319
        %v1321 = vrot.slane %v1316, %v1320
        %1322 = vrot.lane.b32.xlu0 %v1321, 120
        %v1323 = vpop.permute.xlu0 %1322
        %v1325 = vadd.f32 %v1314, %v1323
        %v1326 = vadd.f32 %v1315, %v1323
        %v1327 = vmax.f32 %v1325, 0.0
        %v1328 = vmax.f32 %v1326, 0.0
        %1331 = vrot.lane.b32.xlu0 %v1327, 8
        %v1332 = vpop.permute.xlu0 %1331
        %1333 = vrot.lane.b32.xlu0 %v1328, 8
        %v1334 = vpop.permute.xlu0 %1333
        %vm1337 = vcmask 130112
        %1338 = vst.msk [vmem:[%s1177] sm:$0xff] %vm1337, %v1332
        %1339 = vst.msk [vmem:[%s1177 + $0x8] sm:$0xff] %vm1337, %v1334
      $region76: #{tpu_custom_call.1} parent=63 // pred_fallthru
        _
      %p1340 = scmp.eq.s32.totalorder %s29, 3
      %p1341 = pnand %p865, %p1340
      %p1342 = pneg %p1341
      // Predicated region
      $region81: #{tpu_custom_call.1} parent=63 // pred_check
        _
      $region82: #{tpu_custom_call.1} parent=63 // pred_check_branch
        %1344 = sbr.rel (%p1341) target = $region84
      $region83: #{tpu_custom_call.1} parent=63 // pred_region
        %s1345 = scalar_lea.vmem [#allocation2], 64
        %v1346 = vld [vmem:[%s1345] sm:$0xff]
        %v1347 = vld [vmem:[%s1345 + $0x8] sm:$0xff]
        %v1348 = vld [vmem:[%s1345 + $0x10] sm:$0xff]
        %v1349 = vld [vmem:[%s1345 + $0x18] sm:$0xff]
        %v1350 = vld [vmem:[%s1345 + $0x20] sm:$0xff]
        %v1351 = vld [vmem:[%s1345 + $0x28] sm:$0xff]
        %v1352 = vld [vmem:[%s1345 + $0x30] sm:$0xff]
        %v1353 = vld [vmem:[%s1345 + $0x38] sm:$0xff]
        %v1354 = vld [vmem:[%s2] sm:$0x3]
        %vm1355 = vcmask 523264
        %v1357 = vsel %vm1355, %v1354, 0
        %1359 = vmatprep.subr.mxu0 0.0
        %1360 = vmatpush1.msra.mxu0 %v1346
        %1361 = vmatprep.subr.mxu0 0.0
        %1362 = vmatpush1.msra.mxu0 %v1347
        %1363 = vmatprep.subr.mxu0 0.0
        %1364 = vmatpush1.msra.mxu0 %v1348
        %1365 = vmatprep.subr.mxu0 0.0
        %1366 = vmatpush1.msra.mxu0 %v1349
        %1367 = vmatprep.subr.mxu0 0.0
        %1368 = vmatpush1.msra.mxu0 %v1350
        %1369 = vmatprep.subr.mxu0 0.0
        %1370 = vmatpush1.msra.mxu0 %v1351
        %1371 = vmatprep.subr.mxu0 0.0
        %1372 = vmatpush1.msra.mxu0 %v1352
        %1373 = vmatprep.subr.mxu0 0.0
        %1374 = vmatpush1.msra.mxu0 %v1353
        %1375 = vmatprep.subr.mxu0 0.0
        %1376 = vmatpush1.msra.mxu0 0.0
        %1377 = vmatprep.subr.mxu0 0.0
        %1378 = vmatpush1.msra.mxu0 0.0
        %1379 = vmatprep.subr.mxu0 0.0
        %1380 = vmatpush1.msra.mxu0 0.0
        %1381 = vmatprep.subr.mxu0 0.0
        %1382 = vmatpush1.msra.mxu0 0.0
        %1383 = vmatprep.subr.mxu0 0.0
        %1384 = vmatpush1.msra.mxu0 0.0
        %1385 = vmatprep.subr.mxu0 0.0
        %1386 = vmatpush1.msra.mxu0 0.0
        %1387 = vmatprep.subr.mxu0 0.0
        %1388 = vmatpush1.msra.mxu0 0.0
        %1389 = vmatprep.subr.mxu0 0.0
        %1390 = vmatpush1.msra.mxu0 0.0
        %1391 = vmatprep.subr.mxu0 0.0
        %1392 = vmatpush1.msra.mxu0 0.0
        %1393 = vmatprep.subr.mxu0 0.0
        %1394 = vmatpush1.msra.mxu0 0.0
        %1395 = vmatprep.subr.mxu0 0.0
        %1396 = vmatpush1.msra.mxu0 0.0
        %1397 = vmatprep.subr.mxu0 0.0
        %1398 = vmatpush1.msra.mxu0 0.0
        %1399 = vmatprep.subr.mxu0 0.0
        %1400 = vmatpush1.msra.mxu0 0.0
        %1401 = vmatprep.subr.mxu0 0.0
        %1402 = vmatpush1.msra.mxu0 0.0
        %1403 = vmatprep.subr.mxu0 0.0
        %1404 = vmatpush1.msra.mxu0 0.0
        %1405 = vmatprep.subr.mxu0 0.0
        %1406 = vmatpush1.msra.mxu0 0.0
        %1407 = vmatprep.subr.mxu0 0.0
        %1408 = vmatpush1.msra.mxu0 0.0
        %1409 = vmatprep.subr.mxu0 0.0
        %1410 = vmatpush1.msra.mxu0 0.0
        %1411 = vmatprep.subr.mxu0 0.0
        %1412 = vmatpush1.msra.mxu0 0.0
        %1413 = vmatprep.subr.mxu0 0.0
        %1414 = vmatpush1.msra.mxu0 0.0
        %1415 = vmatprep.subr.mxu0 0.0
        %1416 = vmatpush1.msra.mxu0 0.0
        %1417 = vmatprep.subr.mxu0 0.0
        %1418 = vmatpush1.msra.mxu0 0.0
        %1419 = vmatprep.subr.mxu0 0.0
        %1420 = vmatpush1.msra.mxu0 0.0
        %1421 = vmatprep.subr.mxu0 0.0
        %1422 = vmatpush1.msra.mxu0 0.0
        %1423 = vmatprep.mubr.f32.mxu0 0.0
        %1424 = vmatmul.mubr.f32.gmra.mrb[0].mxu0 %v1357
        %v1425 = vpop.f32.mrb[0].mxu0
        %v1426 = vadd.f32 0.0, %v1425
        %v1427 = vpop.f32.mrb[0].mxu0
        %1428 = vdwg.mxu0
        %v1429 = vld [vmem:[%s7] sm:$0xff]
        %v1430 = vld [vmem:[%s7 + $0x8] sm:$0xff]
        %v1431 = vld [vmem:[%s8] sm:$0x1]
        %v1433 = vlaneseq
        %v1434 = vshrl.u32 %v1433, 7
        %v1435 = vsub.s32 0, %v1434
        %v1436 = vrot.slane %v1431, %v1435
        %vm1438 = vcmask 130048
        %v1440 = vsel %vm1438, %v1426, 0
        %1442 = vmatprep.subr.mxu0 0.0
        %1443 = vmatpush1.msra.mxu0 %v1429
        %1444 = vmatprep.subr.mxu0 0.0
        %1445 = vmatpush1.msra.mxu0 %v1430
        %1446 = vmatprep.subr.mxu0 0.0
        %1447 = vmatpush1.msra.mxu0 0.0
        %1448 = vmatprep.subr.mxu0 0.0
        %1449 = vmatpush1.msra.mxu0 0.0
        %1450 = vmatprep.subr.mxu0 0.0
        %1451 = vmatpush1.msra.mxu0 0.0
        %1452 = vmatprep.subr.mxu0 0.0
        %1453 = vmatpush1.msra.mxu0 0.0
        %1454 = vmatprep.subr.mxu0 0.0
        %1455 = vmatpush1.msra.mxu0 0.0
        %1456 = vmatprep.subr.mxu0 0.0
        %1457 = vmatpush1.msra.mxu0 0.0
        %1458 = vmatprep.subr.mxu0 0.0
        %1459 = vmatpush1.msra.mxu0 0.0
        %1460 = vmatprep.subr.mxu0 0.0
        %1461 = vmatpush1.msra.mxu0 0.0
        %1462 = vmatprep.subr.mxu0 0.0
        %1463 = vmatpush1.msra.mxu0 0.0
        %1464 = vmatprep.subr.mxu0 0.0
        %1465 = vmatpush1.msra.mxu0 0.0
        %1466 = vmatprep.subr.mxu0 0.0
        %1467 = vmatpush1.msra.mxu0 0.0
        %1468 = vmatprep.subr.mxu0 0.0
        %1469 = vmatpush1.msra.mxu0 0.0
        %1470 = vmatprep.subr.mxu0 0.0
        %1471 = vmatpush1.msra.mxu0 0.0
        %1472 = vmatprep.subr.mxu0 0.0
        %1473 = vmatpush1.msra.mxu0 0.0
        %1474 = vmatprep.subr.mxu0 0.0
        %1475 = vmatpush1.msra.mxu0 0.0
        %1476 = vmatprep.subr.mxu0 0.0
        %1477 = vmatpush1.msra.mxu0 0.0
        %1478 = vmatprep.subr.mxu0 0.0
        %1479 = vmatpush1.msra.mxu0 0.0
        %1480 = vmatprep.subr.mxu0 0.0
        %1481 = vmatpush1.msra.mxu0 0.0
        %1482 = vmatprep.subr.mxu0 0.0
        %1483 = vmatpush1.msra.mxu0 0.0
        %1484 = vmatprep.subr.mxu0 0.0
        %1485 = vmatpush1.msra.mxu0 0.0
        %1486 = vmatprep.subr.mxu0 0.0
        %1487 = vmatpush1.msra.mxu0 0.0
        %1488 = vmatprep.subr.mxu0 0.0
        %1489 = vmatpush1.msra.mxu0 0.0
        %1490 = vmatprep.subr.mxu0 0.0
        %1491 = vmatpush1.msra.mxu0 0.0
        %1492 = vmatprep.subr.mxu0 0.0
        %1493 = vmatpush1.msra.mxu0 0.0
        %1494 = vmatprep.subr.mxu0 0.0
        %1495 = vmatpush1.msra.mxu0 0.0
        %1496 = vmatprep.subr.mxu0 0.0
        %1497 = vmatpush1.msra.mxu0 0.0
        %1498 = vmatprep.subr.mxu0 0.0
        %1499 = vmatpush1.msra.mxu0 0.0
        %1500 = vmatprep.subr.mxu0 0.0
        %1501 = vmatpush1.msra.mxu0 0.0
        %1502 = vmatprep.subr.mxu0 0.0
        %1503 = vmatpush1.msra.mxu0 0.0
        %1504 = vmatprep.subr.mxu0 0.0
        %1505 = vmatpush1.msra.mxu0 0.0
        %1506 = vmatprep.mubr.f32.mxu0 0.0
        %1507 = vmatmul.mubr.f32.gmra.mrb[0].mxu0 %v1440
        %v1508 = vpop.f32.mrb[0].mxu0
        %v1509 = vadd.f32 %v1436, %v1508
        %v1510 = vpop.f32.mrb[0].mxu0
        %1511 = vdwg.mxu0
        %v1512 = vmax.f32 %v1509, 0.0
        %v1513 = vld [vmem:[%s9] sm:$0xff]
        %v1514 = vld [vmem:[%s9 + $0x8] sm:$0xff]
        %v1515 = vld [vmem:[%s9 + $0x10] sm:$0xff]
        %v1516 = vld [vmem:[%s9 + $0x18] sm:$0xff]
        %v1517 = vld [vmem:[%s9 + $0x20] sm:$0xff]
        %v1518 = vld [vmem:[%s9 + $0x28] sm:$0xff]
        %v1519 = vld [vmem:[%s9 + $0x30] sm:$0xff]
        %v1520 = vld [vmem:[%s9 + $0x38] sm:$0xff]
        %v1521 = vld [vmem:[%s9 + $0x40] sm:$0xff]
        %v1522 = vld [vmem:[%s9 + $0x48] sm:$0xff]
        %v1523 = vld [vmem:[%s9 + $0x50] sm:$0xff]
        %v1524 = vld [vmem:[%s9 + $0x58] sm:$0xff]
        %v1525 = vld [vmem:[%s9 + $0x60] sm:$0xff]
        %v1526 = vld [vmem:[%s9 + $0x68] sm:$0xff]
        %v1527 = vld [vmem:[%s9 + $0x70] sm:$0xff]
        %v1528 = vld [vmem:[%s9 + $0x78] sm:$0xff]
        %v1529 = vld [vmem:[#allocation5] sm:$0x1]
        %v1531 = vlaneseq
        %v1532 = vshrl.u32 %v1531, 7
        %v1533 = vsub.s32 0, %v1532
        %v1534 = vrot.slane %v1529, %v1533
        %1536 = vmatprep.subr.mxu0 0.0
        %1537 = vmatpush1.msra.mxu0 %v1513
        %1538 = vmatprep.subr.mxu0 0.0
        %1539 = vmatpush1.msra.mxu0 %v1514
        %1540 = vmatprep.subr.mxu0 0.0
        %1541 = vmatpush1.msra.mxu0 %v1515
        %1542 = vmatprep.subr.mxu0 0.0
        %1543 = vmatpush1.msra.mxu0 %v1516
        %1544 = vmatprep.subr.mxu0 0.0
        %1545 = vmatpush1.msra.mxu0 %v1517
        %1546 = vmatprep.subr.mxu0 0.0
        %1547 = vmatpush1.msra.mxu0 %v1518
        %1548 = vmatprep.subr.mxu0 0.0
        %1549 = vmatpush1.msra.mxu0 %v1519
        %1550 = vmatprep.subr.mxu0 0.0
        %1551 = vmatpush1.msra.mxu0 %v1520
        %1552 = vmatprep.subr.mxu0 0.0
        %1553 = vmatpush1.msra.mxu0 %v1521
        %1554 = vmatprep.subr.mxu0 0.0
        %1555 = vmatpush1.msra.mxu0 %v1522
        %1556 = vmatprep.subr.mxu0 0.0
        %1557 = vmatpush1.msra.mxu0 %v1523
        %1558 = vmatprep.subr.mxu0 0.0
        %1559 = vmatpush1.msra.mxu0 %v1524
        %1560 = vmatprep.subr.mxu0 0.0
        %1561 = vmatpush1.msra.mxu0 %v1525
        %1562 = vmatprep.subr.mxu0 0.0
        %1563 = vmatpush1.msra.mxu0 %v1526
        %1564 = vmatprep.subr.mxu0 0.0
        %1565 = vmatpush1.msra.mxu0 %v1527
        %1566 = vmatprep.subr.mxu0 0.0
        %1567 = vmatpush1.msra.mxu0 %v1528
        %1568 = vmatprep.subr.mxu0 0.0
        %1569 = vmatpush1.msra.mxu0 0.0
        %1570 = vmatprep.subr.mxu0 0.0
        %1571 = vmatpush1.msra.mxu0 0.0
        %1572 = vmatprep.subr.mxu0 0.0
        %1573 = vmatpush1.msra.mxu0 0.0
        %1574 = vmatprep.subr.mxu0 0.0
        %1575 = vmatpush1.msra.mxu0 0.0
        %1576 = vmatprep.subr.mxu0 0.0
        %1577 = vmatpush1.msra.mxu0 0.0
        %1578 = vmatprep.subr.mxu0 0.0
        %1579 = vmatpush1.msra.mxu0 0.0
        %1580 = vmatprep.subr.mxu0 0.0
        %1581 = vmatpush1.msra.mxu0 0.0
        %1582 = vmatprep.subr.mxu0 0.0
        %1583 = vmatpush1.msra.mxu0 0.0
        %1584 = vmatprep.subr.mxu0 0.0
        %1585 = vmatpush1.msra.mxu0 0.0
        %1586 = vmatprep.subr.mxu0 0.0
        %1587 = vmatpush1.msra.mxu0 0.0
        %1588 = vmatprep.subr.mxu0 0.0
        %1589 = vmatpush1.msra.mxu0 0.0
        %1590 = vmatprep.subr.mxu0 0.0
        %1591 = vmatpush1.msra.mxu0 0.0
        %1592 = vmatprep.subr.mxu0 0.0
        %1593 = vmatpush1.msra.mxu0 0.0
        %1594 = vmatprep.subr.mxu0 0.0
        %1595 = vmatpush1.msra.mxu0 0.0
        %1596 = vmatprep.subr.mxu0 0.0
        %1597 = vmatpush1.msra.mxu0 0.0
        %1598 = vmatprep.subr.mxu0 0.0
        %1599 = vmatpush1.msra.mxu0 0.0
        %1600 = vmatprep.mubr.f32.mxu0 0.0
        %1601 = vmatmul.mubr.f32.gmra.mrb[0].mxu0 %v1512
        %v1602 = vpop.f32.mrb[0].mxu0
        %v1603 = vadd.f32 %v1534, %v1602
        %v1604 = vpop.f32.mrb[0].mxu0
        %1605 = vdwg.mxu0
        %vm1606 = vcmask 1024
        %1607 = vst.msk [vmem:[%s11] sm:$0x3] %vm1606, %v1603
      $region84: #{tpu_custom_call.1} parent=63 // pred_fallthru
        _
      // Predicated region
      $region85: #{tpu_custom_call.1} parent=63 // pred_check
        %p1608 = pneg %p285
      $region86: #{tpu_custom_call.1} parent=63 // pred_check_branch
        %1610 = sbr.rel (%p1608) target = $region88
      $region87: #{tpu_custom_call.1} parent=63 // pred_region
        _
      $region88: #{tpu_custom_call.1} parent=63 // pred_fallthru
        _
      // Predicated region
      $region89: #{tpu_custom_call.1} parent=63 // pred_check
        %p1611 = pneg %p285
      $region90: #{tpu_custom_call.1} parent=63 // pred_check_branch
        %1613 = sbr.rel (%p1611) target = $region92
      $region91: #{tpu_custom_call.1} parent=63 // pred_region
        _
      $region92: #{tpu_custom_call.1} parent=63 // pred_fallthru
        _
    $region64: #{tpu_custom_call.1} parent=5 // pred_fallthru
      _
    %p1614 = scmp.le.s32.totalorder 2, %s19
    // Predicated region
    $region93: #{tpu_custom_call.1} parent=5 // pred_check
      %p1615 = pneg %p1614
    $region94: #{tpu_custom_call.1} parent=5 // pred_check_branch
      %1617 = sbr.rel (%p1615) target = $region96
    $region95: #{tpu_custom_call.1} parent=5 // pred_region
      %s1618 = ssub.s32 %s19, 2
    $region96: #{tpu_custom_call.1} parent=5 // pred_fallthru
      _
  $region6: #{tpu_custom_call.1} parent=0 // loop_footer
    %s23 = sadd.s32 1, %s19
  $region7: #{tpu_custom_call.1} parent=0 // loop_footer_branch
    %18 = sbr.rel target = $region3
  $region8: #{tpu_custom_call.1} parent=0 // loop_exit
    _

</llo_original>
